<compile_context>
chip_gen: v7x
topology: tpu7x:2x2x1
jax: 0.10.0
libtpu: 0.0.40
codegen_flags: <defaults>
</compile_context>

<pallas_src>
import functools

import numpy as np
import jax
import jax.numpy as jnp
from jax.experimental import pallas as pl
from jax.experimental.pallas import tpu as pltpu


def basic_block_kernel(x_ref, t1_ref, t2_ref, b_ref, out_ref, *, img_h):
    """One grid step = NB images in lane-merged layout (NB*H, W*C).

    x_ref:   (NB*H, WC)  f32   input rows (also the residual path)
    t1_ref:  (3*WC, WC)  bf16  conv1 K-stacked block-Toeplitz weights (BN1 scale folded)
    t2_ref:  (3*WC, WC)  bf16  conv2 K-stacked block-Toeplitz weights (BN2 scale folded)
    b_ref:   (2, WC)     f32   folded BN biases (row 0: bn1, row 1: bn2)
    out_ref: (NB*H, WC)  f32
    """
    m, wc = out_ref.shape
    x = x_ref[...]                      # (M, WC) f32, residual path
    b = b_ref[...]                      # (2, WC) f32

    # Per-image H-boundary masks on the flattened row axis, hoisted and reused
    # by both convs.  Row i belongs to image i // img_h, local row i % img_h.
    local_row = jax.lax.broadcasted_iota(jnp.int32, (m, wc), 0) % img_h
    not_first = local_row != 0
    not_last = local_row != (img_h - 1)

    def conv3x3(a, t_ref):
        # a: (M, WC) f32.  Build the K-stacked input [x[h-1], x[h], x[h+1]] per
        # output row h.  pltpu.roll moves rows across the whole slab; the masks
        # zero the rows that would otherwise read across an image boundary
        # (i.e. they implement the conv's H zero-padding).  Shift m-1 == -1 mod m.
        a_prev = jnp.where(not_first, pltpu.roll(a, 1, axis=0), 0.0)
        a_next = jnp.where(not_last, pltpu.roll(a, m - 1, axis=0), 0.0)
        a_cat = jnp.concatenate([a_prev, a, a_next], axis=-1).astype(jnp.bfloat16)
        # Single MXU pass per conv: (M, 3*WC) x (3*WC, WC), f32 accumulation.
        return jnp.dot(a_cat, t_ref[...], preferred_element_type=jnp.float32)

    # conv1 -> bn1 (scale folded into t1, bias added here) -> relu
    y = jnp.maximum(conv3x3(x, t1_ref) + b[0:1, :], 0.0)
    # conv2 -> bn2 -> + residual -> relu
    z = conv3x3(y, t2_ref) + b[1:2, :] + x
    out_ref[...] = jnp.maximum(z, 0.0).astype(out_ref.dtype)


def _fold_bn(gamma, beta, mean, var, eps):
    g = np.asarray(gamma, np.float32)
    be = np.asarray(beta, np.float32)
    m = np.asarray(mean, np.float32)
    v = np.asarray(var, np.float32)
    scale = g / np.sqrt(v + eps)
    bias = be - m * scale
    return scale, bias


def _toeplitz_conv_weights(w_oihw, out_scale, W):
    """(Cout, Cin, 3, 3) torch conv weight -> (3*W*Cin, W*Cout) K-stacked
    block-Toeplitz matrix acting on lane-merged (.., W*Cin) rows.

    Row block [kh*W*Cin + wi*Cin + ci] couples input row (h + kh - 1), column
    wi, channel ci to output column wo, channel co.  The kw taps and the
    W-direction zero padding are baked in; the BN output scale is folded into
    the output channels.  Returned in bf16 for the MXU."""
    w = np.asarray(w_oihw, np.float32)                   # (Cout, Cin, 3, 3)
    cout, cin = w.shape[0], w.shape[1]
    wt = (np.transpose(w, (2, 3, 1, 0))                  # (kh, kw, Cin, Cout)
          * np.asarray(out_scale, np.float32)[None, None, None, :])
    T = np.zeros((3, W * cin, W * cout), np.float32)
    for kh in range(3):
        for wo in range(W):
            for kw in range(3):
                wi = wo + kw - 1
                if 0 <= wi < W:
                    T[kh, wi * cin:(wi + 1) * cin,
                          wo * cout:(wo + 1) * cout] = wt[kh, kw]
    return jnp.asarray(T.reshape(3 * W * cin, W * cout), jnp.bfloat16)


def _fold_params(params, W, eps):
    s1, b1 = _fold_bn(params["g1"], params["be1"], params["m1"], params["v1"], eps)
    s2, b2 = _fold_bn(params["g2"], params["be2"], params["m2"], params["v2"], eps)
    t1 = _toeplitz_conv_weights(params["w1"], s1, W)     # (3*WC, WC) bf16
    t2 = _toeplitz_conv_weights(params["w2"], s2, W)     # (3*WC, WC) bf16
    biases = jnp.asarray(np.stack([np.tile(b1, W), np.tile(b2, W)]),
                         jnp.float32)                    # (2, WC) f32
    return t1, t2, biases


def _pick_images_per_step(n, h, wc, vmem_budget_bytes=8 << 20):
    """Images per grid step (NB).  Goals, in order: stay within a conservative
    per-step VMEM budget (in+out f32 blocks, double-buffered); keep >= 2 grid
    steps so v7x's two TensorCores both get work; and make NB*H >= 256 rows so
    the 256-wide MXU on v6e/v7x (128-wide on v5e) runs full-height matmuls."""
    divisors = [d for d in range(1, n + 1) if n % d == 0]
    cands = [d for d in divisors if n // d >= 2] or divisors
    fits = [d for d in cands if d * h * wc * 4 * 2 * 2 <= vmem_budget_bytes]
    cands = fits or cands[:1]
    full = [d for d in cands if d * h >= 256]
    return min(full) if full else max(cands)


def basic_block_pallas_nhwc(x_nhwc, params, eps=1e-5):
    """BasicBlock forward on NHWC input; returns NHWC.  No layout transposes —
    only free contiguous reshapes to/from the lane-merged (N*H, W*C) layout."""
    N, H, W, C = x_nhwc.shape
    assert params["w1"].shape == (C, C, 3, 3), "BasicBlock residual add needs Cin == Cout"
    assert params["w2"].shape == (C, C, 3, 3), "BasicBlock residual add needs Cin == Cout"
    WC = W * C
    # Lane-dense contract of this kernel (unmasked 128-lane loads/stores,
    # tile-aligned merged reshapes).
    assert WC % 128 == 0, f"W*C={WC} must be a multiple of 128 for this kernel"
    assert H % 8 == 0, f"H={H} must be a multiple of 8 (sublane tiling)"

    t1, t2, biases = _fold_params(params, W, eps)

    nb = _pick_images_per_step(N, H, WC)
    m = nb * H                      # matmul M per grid step
    grid = (N // nb,)

    x = x_nhwc.astype(jnp.float32).reshape(N * H, WC)    # free contiguous reshape

    # Advisory cost estimate: 2 convs x (2*M*K*N) MXU flops over the whole grid.
    flops = 2 * 2 * (N * H) * (3 * WC) * WC
    bytes_accessed = 2 * N * H * WC * 4 + 2 * (3 * WC * WC * 2) + 2 * WC * 4

    out = pl.pallas_call(
        functools.partial(basic_block_kernel, img_h=H),
        out_shape=jax.ShapeDtypeStruct((N * H, WC), jnp.float32),
        grid_spec=pltpu.PrefetchScalarGridSpec(
            num_scalar_prefetch=0,
            grid=grid,
            in_specs=[
                pl.BlockSpec((m, WC), lambda n: (n, 0)),
                # Grid-invariant weights / bias: constant index_map, so they are
                # DMA'd once and stay resident in VMEM across all grid steps.
                # (Their double-buffer copy costs only ~200 KiB at WC=128, so we
                # skip single-buffering them for now.)
                pl.BlockSpec((3 * WC, WC), lambda n: (0, 0)),
                pl.BlockSpec((3 * WC, WC), lambda n: (0, 0)),
                pl.BlockSpec((2, WC), lambda n: (0, 0)),
            ],
            out_specs=pl.BlockSpec((m, WC), lambda n: (n, 0)),
        ),
        compiler_params=pltpu.CompilerParams(
            dimension_semantics=("parallel",)),
        cost_estimate=pl.CostEstimate(
            flops=flops, transcendentals=0, bytes_accessed=bytes_accessed),
    )(x, t1, t2, biases)

    return out.reshape(N, H, W, C)


def basic_block_pallas(x_nchw, params, eps=1e-5):
    """PyTorch-interface (NCHW) parity wrapper.  The two transposes here are
    pure layout plumbing; production callers holding NHWC activations should
    call basic_block_pallas_nhwc directly and skip both HBM round-trips."""
    x_nhwc = jnp.transpose(x_nchw, (0, 2, 3, 1))
    out = basic_block_pallas_nhwc(x_nhwc, params, eps=eps)
    return jnp.transpose(out, (0, 3, 1, 2))


def basic_block_reference(x_nchw, params, eps=1e-5, match_kernel_precision=False):
    """Pure-JAX reference of the module forward (inference-mode BN).
    match_kernel_precision=True folds BN scale into the weights (same numpy
    fold as the kernel) and casts conv inputs to bf16 with f32 accumulation,
    mirroring the kernel's precision."""
    x = jnp.transpose(x_nchw, (0, 2, 3, 1)).astype(jnp.float32)
    dn = ("NHWC", "HWIO", "NHWC")

    def conv_bn(a, w_oihw, g, be, m, v):
        s_np, b_np = _fold_bn(g, be, m, v, eps)          # same fold as the kernel
        s = jnp.asarray(s_np, jnp.float32)
        b = jnp.asarray(b_np, jnp.float32)
        w = jnp.transpose(jnp.asarray(w_oihw, jnp.float32), (2, 3, 1, 0))  # HWIO
        if match_kernel_precision:
            out = jax.lax.conv_general_dilated(
                a.astype(jnp.bfloat16), (w * s).astype(jnp.bfloat16),
                (1, 1), "SAME", dimension_numbers=dn,
                preferred_element_type=jnp.float32)
            return out + b
        out = jax.lax.conv_general_dilated(a, w, (1, 1), "SAME",
                                           dimension_numbers=dn)
        return out * s + b

    y = jax.nn.relu(conv_bn(x, params["w1"], params["g1"], params["be1"],
                            params["m1"], params["v1"]))
    z = conv_bn(y, params["w2"], params["g2"], params["be2"],
                params["m2"], params["v2"])
    out = jax.nn.relu(z + x)
    return jnp.transpose(out, (0, 3, 1, 2))


if __name__ == "__main__":
    # inplanes == planes, W*C = 128 (lane-dense).  N=16 -> NB=8 images per grid
    # step (M = NB*H = 128 matmul rows) and 2 parallel grid steps (v7x megacore).
    N, C, H, W = 16, 8, 16, 16
    key = jax.random.PRNGKey(0)
    ks = jax.random.split(key, 11)

    params = {
        "w1": jax.random.normal(ks[0], (C, C, 3, 3), jnp.float32) * 0.1,
        "w2": jax.random.normal(ks[1], (C, C, 3, 3), jnp.float32) * 0.1,
        "g1": 1.0 + 0.1 * jax.random.normal(ks[2], (C,), jnp.float32),
        "be1": 0.1 * jax.random.normal(ks[3], (C,), jnp.float32),
        "m1": 0.1 * jax.random.normal(ks[4], (C,), jnp.float32),
        "v1": 0.5 + jnp.abs(jax.random.normal(ks[5], (C,), jnp.float32)),
        "g2": 1.0 + 0.1 * jax.random.normal(ks[6], (C,), jnp.float32),
        "be2": 0.1 * jax.random.normal(ks[7], (C,), jnp.float32),
        "m2": 0.1 * jax.random.normal(ks[8], (C,), jnp.float32),
        "v2": 0.5 + jnp.abs(jax.random.normal(ks[9], (C,), jnp.float32)),
    }
    x = jax.random.normal(ks[10], (N, C, H, W), jnp.float32)

    out = jax.block_until_ready(basic_block_pallas(x, params))
    assert out.shape == (N, C, H, W)

    # Tight check against a reference at matching (bf16-in / f32-accum) precision.
    ref_mixed = jax.block_until_ready(
        basic_block_reference(x, params, match_kernel_precision=True))
    assert jnp.allclose(out, ref_mixed, atol=1e-2, rtol=1e-2), \
        float(jnp.max(jnp.abs(out - ref_mixed)))

    # Loose check against the full-f32 module math (bf16 MXU inputs in kernel).
    ref_f32 = jax.block_until_ready(basic_block_reference(x, params))
    assert jnp.allclose(out, ref_f32, atol=1e-1, rtol=1e-1), \
        float(jnp.max(jnp.abs(out - ref_f32)))

    print("KERNEL_OK")
</pallas_src>

<mosaic_0001>
module attributes {stable_mosaic.version = 11 : i64} {
  func.func @basic_block_kernel(%arg0: i32, %arg1: memref<128x128xf32, #tpu.memory_space<vmem>>, %arg2: memref<384x128xbf16, #tpu.memory_space<vmem>>, %arg3: memref<384x128xbf16, #tpu.memory_space<vmem>>, %arg4: memref<2x128xf32, #tpu.memory_space<vmem>>, %arg5: memref<128x128xf32, #tpu.memory_space<vmem>>) attributes {dimension_semantics = [#tpu.dimension_semantics<parallel>], iteration_bounds = array<i64: 2>, scalar_prefetch = 0 : i64, scratch_operands = 0 : i64, tpu.core_type = #tpu.core_type<tc>, window_params = [{transform_indices = @transform_0, window_bounds = array<i64: 128, 128>}, {pipeline_mode = #tpu.pipeline_mode<synchronous>, transform_indices = @transform_1, window_bounds = array<i64: 384, 128>}, {pipeline_mode = #tpu.pipeline_mode<synchronous>, transform_indices = @transform_2, window_bounds = array<i64: 384, 128>}, {pipeline_mode = #tpu.pipeline_mode<synchronous>, transform_indices = @transform_3, window_bounds = array<i64: 2, 128>}, {transform_indices = @transform_4, window_bounds = array<i64: 128, 128>}]} {
    %c0 = arith.constant 0 : index
    %c0_0 = arith.constant 0 : index
    %0 = vector.load %arg1[%c0, %c0_0] : memref<128x128xf32, #tpu.memory_space<vmem>>, vector<128x128xf32>
    %c0_1 = arith.constant 0 : index
    %c0_2 = arith.constant 0 : index
    %1 = vector.load %arg4[%c0_1, %c0_2] : memref<2x128xf32, #tpu.memory_space<vmem>>, vector<2x128xf32>
    %2 = tpu.iota {dimensions = array<i32: 0>} : vector<128x128xi32>
    %c16_i32 = arith.constant 16 : i32
    %c0_i32 = arith.constant 0 : i32
    %3 = arith.cmpi eq, %c16_i32, %c0_i32 : i32
    %c1_i32 = arith.constant 1 : i32
    %4 = arith.select %3, %c1_i32, %c16_i32 : i32
    %5 = vector.broadcast %4 : i32 to vector<128x128xi32>
    %6 = arith.remsi %2, %5 : vector<128x128xi32>
    %c0_i32_3 = arith.constant 0 : i32
    %7 = vector.broadcast %c0_i32_3 : i32 to vector<128x128xi32>
    %8 = arith.cmpi ne, %6, %7 : vector<128x128xi32>
    %c0_i32_4 = arith.constant 0 : i32
    %9 = vector.broadcast %c0_i32_4 : i32 to vector<128x128xi32>
    %10 = arith.cmpi slt, %6, %9 : vector<128x128xi32>
    %c0_i32_5 = arith.constant 0 : i32
    %11 = arith.cmpi slt, %4, %c0_i32_5 : i32
    %12 = vector.broadcast %11 : i1 to vector<128x128xi1>
    %13 = vector.broadcast %12 : vector<128x128xi1> to vector<128x128xi1>
    %14 = arith.xori %10, %13 : vector<128x128xi1>
    %15 = arith.andi %14, %8 : vector<128x128xi1>
    %16 = vector.broadcast %4 : i32 to vector<128x128xi32>
    %17 = arith.addi %6, %16 : vector<128x128xi32>
    %18 = arith.select %15, %17, %6 : vector<128x128xi1>, vector<128x128xi32>
    %c0_i32_6 = arith.constant 0 : i32
    %19 = vector.broadcast %c0_i32_6 : i32 to vector<128x128xi32>
    %20 = arith.cmpi ne, %18, %19 : vector<128x128xi32>
    %c15_i32 = arith.constant 15 : i32
    %21 = vector.broadcast %c15_i32 : i32 to vector<128x128xi32>
    %22 = arith.cmpi ne, %18, %21 : vector<128x128xi32>
    %c1_i32_7 = arith.constant 1 : i32
    %23 = tpu.dynamic_rotate %0 by %c1_i32_7 dim 0 : vector<128x128xf32>, i32 -> vector<128x128xf32>
    %cst = arith.constant 0.000000e+00 : f32
    %24 = vector.broadcast %cst : f32 to vector<128x128xf32>
    %25 = arith.select %20, %23, %24 : vector<128x128xi1>, vector<128x128xf32>
    %c127_i32 = arith.constant 127 : i32
    %26 = tpu.dynamic_rotate %0 by %c127_i32 dim 0 : vector<128x128xf32>, i32 -> vector<128x128xf32>
    %cst_8 = arith.constant 0.000000e+00 : f32
    %27 = vector.broadcast %cst_8 : f32 to vector<128x128xf32>
    %28 = arith.select %22, %26, %27 : vector<128x128xi1>, vector<128x128xf32>
    %29 = tpu.concatenate %25, %0, %28 in 1 : vector<128x128xf32>, vector<128x128xf32>, vector<128x128xf32> -> vector<128x384xf32>
    %30 = arith.truncf %29 : vector<128x384xf32> to vector<128x384xbf16>
    %c0_9 = arith.constant 0 : index
    %c0_10 = arith.constant 0 : index
    %31 = vector.load %arg2[%c0_9, %c0_10] : memref<384x128xbf16, #tpu.memory_space<vmem>>, vector<384x128xbf16>
    %cst_11 = arith.constant dense<0.000000e+00> : vector<128x128xf32>
    %32 = tpu.matmul %30, %31, %cst_11 {dimension_numbers = #tpu.dot_dimension_numbers<[1], [0], [0], [1], [0, 0, 1, 1], [], []>} : vector<128x384xbf16>, vector<384x128xbf16>, vector<128x128xf32> -> vector<128x128xf32>
    %33 = vector.extract_strided_slice %1 {offsets = [0, 0], sizes = [1, 128], strides = [1, 1]} : vector<2x128xf32> to vector<1x128xf32>
    %34 = vector.broadcast %33 : vector<1x128xf32> to vector<128x128xf32>
    %35 = arith.addf %32, %34 : vector<128x128xf32>
    %cst_12 = arith.constant 0.000000e+00 : f32
    %36 = vector.broadcast %cst_12 : f32 to vector<128x128xf32>
    %37 = arith.maximumf %35, %36 : vector<128x128xf32>
    %c1_i32_13 = arith.constant 1 : i32
    %38 = tpu.dynamic_rotate %37 by %c1_i32_13 dim 0 : vector<128x128xf32>, i32 -> vector<128x128xf32>
    %cst_14 = arith.constant 0.000000e+00 : f32
    %39 = vector.broadcast %cst_14 : f32 to vector<128x128xf32>
    %40 = arith.select %20, %38, %39 : vector<128x128xi1>, vector<128x128xf32>
    %c127_i32_15 = arith.constant 127 : i32
    %41 = tpu.dynamic_rotate %37 by %c127_i32_15 dim 0 : vector<128x128xf32>, i32 -> vector<128x128xf32>
    %cst_16 = arith.constant 0.000000e+00 : f32
    %42 = vector.broadcast %cst_16 : f32 to vector<128x128xf32>
    %43 = arith.select %22, %41, %42 : vector<128x128xi1>, vector<128x128xf32>
    %44 = tpu.concatenate %40, %37, %43 in 1 : vector<128x128xf32>, vector<128x128xf32>, vector<128x128xf32> -> vector<128x384xf32>
    %45 = arith.truncf %44 : vector<128x384xf32> to vector<128x384xbf16>
    %c0_17 = arith.constant 0 : index
    %c0_18 = arith.constant 0 : index
    %46 = vector.load %arg3[%c0_17, %c0_18] : memref<384x128xbf16, #tpu.memory_space<vmem>>, vector<384x128xbf16>
    %cst_19 = arith.constant dense<0.000000e+00> : vector<128x128xf32>
    %47 = tpu.matmul %45, %46, %cst_19 {dimension_numbers = #tpu.dot_dimension_numbers<[1], [0], [0], [1], [0, 0, 1, 1], [], []>} : vector<128x384xbf16>, vector<384x128xbf16>, vector<128x128xf32> -> vector<128x128xf32>
    %48 = vector.extract_strided_slice %1 {offsets = [1, 0], sizes = [1, 128], strides = [1, 1]} : vector<2x128xf32> to vector<1x128xf32>
    %49 = vector.broadcast %48 : vector<1x128xf32> to vector<128x128xf32>
    %50 = arith.addf %47, %49 : vector<128x128xf32>
    %51 = arith.addf %50, %0 : vector<128x128xf32>
    %cst_20 = arith.constant 0.000000e+00 : f32
    %52 = vector.broadcast %cst_20 : f32 to vector<128x128xf32>
    %53 = arith.maximumf %51, %52 : vector<128x128xf32>
    %c0_21 = arith.constant 0 : index
    %c0_22 = arith.constant 0 : index
    %54 = vector.load %arg5[%c0_21, %c0_22] : memref<128x128xf32, #tpu.memory_space<vmem>>, vector<128x128xf32>
    tpu.vector_store %arg5[%c0_21, %c0_22], %53 {strides = array<i32>} : memref<128x128xf32, #tpu.memory_space<vmem>>, vector<128x128xf32>,
    return
  }
  func.func @transform_0(%arg0: i32) -> (i32, i32) {
    %c0_i32 = arith.constant 0 : i32
    %c0_i32_0 = arith.constant 0 : i32
    return %arg0, %c0_i32 : i32, i32
  }
  func.func @transform_1(%arg0: i32) -> (i32, i32) {
    %c0_i32 = arith.constant 0 : i32
    %c0_i32_0 = arith.constant 0 : i32
    %c0_i32_1 = arith.constant 0 : i32
    return %c0_i32, %c0_i32_0 : i32, i32
  }
  func.func @transform_2(%arg0: i32) -> (i32, i32) {
    %c0_i32 = arith.constant 0 : i32
    %c0_i32_0 = arith.constant 0 : i32
    %c0_i32_1 = arith.constant 0 : i32
    return %c0_i32, %c0_i32_0 : i32, i32
  }
  func.func @transform_3(%arg0: i32) -> (i32, i32) {
    %c0_i32 = arith.constant 0 : i32
    %c0_i32_0 = arith.constant 0 : i32
    %c0_i32_1 = arith.constant 0 : i32
    return %c0_i32, %c0_i32_0 : i32, i32
  }
  func.func @transform_4(%arg0: i32) -> (i32, i32) {
    %c0_i32 = arith.constant 0 : i32
    %c0_i32_0 = arith.constant 0 : i32
    return %arg0, %c0_i32 : i32, i32
  }
}

</mosaic_0001>

<llo_original>
// kernel: tpu_custom_call.1
$region0: #{tpu_custom_call.1}
  #allocation0 [shape = 'u32[]', space=smem, size = 0x4, offset = 0x4, fixed_abs, tag = 'smem constant byte address 0x4 - core index']
  #allocation1 [shape = 'u32[144,128]{1,0:T(1,128)}', space=vmem, size = 0x12000, scoped, tag = 'internal scratch']
  %s0 = inlined_call_operand.hbm [shape: f32[256,128], index: 0, kind: input, shape index: {}]
  %s1 = inlined_call_operand.hbm [shape: bf16[384,128], index: 1, kind: input, shape index: {}]
  %s2 = inlined_call_operand.hbm [shape: bf16[384,128], index: 2, kind: input, shape index: {}]
  %s3 = inlined_call_operand.vmem [shape: f32[2,128], index: 3, kind: input, shape index: {}]
  %s4 = inlined_call_operand.hbm [shape: f32[256,128], index: 4, kind: output, shape index: {}]
  %s5 = sld [smem:[#allocation0]]
  $region61: #{tpu_custom_call.1} parent=0
    _
  %s7 = ssub.s32 1, %s5
  %s8 = scalar_select 0, %s7, %s5
  $region1: #{tpu_custom_call.1} parent=0
    #allocation2 [shape = 'u8[131072]{0}', space=vmem, size = 0x20000, scoped, tag = 'input window, operand 0']
    #allocation3 [shape = 's32[2]{0}', space=sflag, size = 0x8, scoped, tag = 'scoped memory for tpu_custom_call.1']
    #allocation4 [shape = 's32[2]{0}', space=sflag, size = 0x8, scoped, tag = 'scoped memory for tpu_custom_call.1']
    #allocation5 [shape = 'u8[98304]{0}', space=vmem, size = 0x18000, scoped, tag = 'input window, operand 1, single buffered']
    #allocation6 [shape = 's32[1]{0}', space=sflag, size = 0x4, scoped, tag = 'scoped memory for tpu_custom_call.1']
    #allocation7 [shape = 'u8[98304]{0}', space=vmem, size = 0x18000, scoped, tag = 'input window, operand 2, single buffered']
    #allocation8 [shape = 'u8[131072]{0}', space=vmem, size = 0x20000, scoped, tag = 'output window, operand 0']
    %9 = vsyncpa [#allocation3], 0
    %s10 = scalar_lea.sflag [#allocation3], 1
    %11 = vsyncpa %s10, 0
    %12 = vsyncpa [#allocation6], 0
    %13 = vsyncpa [#allocation4], 0
    %s14 = scalar_lea.sflag [#allocation4], 1
    %15 = vsyncpa %s14, 0
    loop: start=0, step=1, limit=4
    $region2: #{tpu_custom_call.1} parent=1 // loop_pre_header
      _
    $region3: #{tpu_custom_call.1} parent=1 // loop_header
      %s17 = sphi 0, %s21
      %p18 = scmp.ge.s32.totalorder %s17, 4
      %s27 = sphi 0, %s29
      %s30 = sphi 0, %s27
      %s31 = sphi 0, %s30
      %s47 = sphi 0, %s31
      %s51 = sphi 0, %s51
      %s53 = sphi 0, %s51
      %s54 = sphi 0, %s53
      %s68 = sphi 0, %s54
      %s72 = sphi 0, %s72
      %s74 = sphi 0, %s72
      %s75 = sphi 0, %s74
      %s89 = sphi 0, %s75
      %s93 = sphi 0, %s93
      %s95 = sphi 0, %s93
      %s96 = sphi 0, %s95
      %s110 = sphi 0, %s96
      %s116 = sphi 0, %s118
      %s119 = sphi 0, %s116
      %s120 = sphi 0, %s119
      %s136 = sphi 0, %s120
    $region4: #{tpu_custom_call.1} parent=1 // loop_header_branch
      %20 = sbr.rel (%p18) target = $region8
    $region5: #{tpu_custom_call.1} parent=1 // loop_body
      %s22 = ssub.s32 %s17, 1
      %s23 = ssub.s32 %s17, 2
      %s24 = sadd.s32 %s17, 1
      %s25 = ssub.s32 %s17, %s24
      %p26 = scmp.eq.s32.totalorder %s25, 0
      %s28 = sadd.s32 %s27, 1
      %s29 = scalar_select %p26, %s27, %s28
      %p32 = pneg %p26
      %p33 = scmp.eq.s32.totalorder %s17, 1
      %p34 = por %p32, %p33
      %p35 = scmp.ne.s32.totalorder %s27, %s30
      %p36 = scmp.eq.s32.totalorder %s17, 0
      %p37 = por %p35, %p36
      %p38 = scmp.ne.s32.totalorder %s27, %s30
      %p39 = scmp.eq.s32.totalorder %s22, 1
      %p40 = por %p38, %p39
      %p41 = scmp.ne.s32.totalorder %s30, %s31
      %p42 = scmp.eq.s32.totalorder %s22, 0
      %p43 = por %p41, %p42
      %p44 = scmp.ne.s32.totalorder %s30, %s31
      %p45 = scmp.eq.s32.totalorder %s23, 1
      %p46 = por %p44, %p45
      %p48 = scmp.ne.s32.totalorder %s31, %s47
      %p49 = scmp.eq.s32.totalorder %s23, 0
      %p50 = por %p48, %p49
      %s52 = sadd.s32 %s51, 1
      %p55 = scmp.eq.s32.totalorder %s17, 1
      %p56 = scmp.ne.s32.totalorder %s51, %s53
      %p57 = scmp.eq.s32.totalorder %s17, 0
      %p58 = por %p56, %p57
      %p59 = scmp.ne.s32.totalorder %s51, %s53
      %p60 = scmp.eq.s32.totalorder %s22, 1
      %p61 = por %p59, %p60
      %p62 = scmp.ne.s32.totalorder %s53, %s54
      %p63 = scmp.eq.s32.totalorder %s22, 0
      %p64 = por %p62, %p63
      %p65 = scmp.ne.s32.totalorder %s53, %s54
      %p66 = scmp.eq.s32.totalorder %s23, 1
      %p67 = por %p65, %p66
      %p69 = scmp.ne.s32.totalorder %s54, %s68
      %p70 = scmp.eq.s32.totalorder %s23, 0
      %p71 = por %p69, %p70
      %s73 = sadd.s32 %s72, 1
      %p76 = scmp.eq.s32.totalorder %s17, 1
      %p77 = scmp.ne.s32.totalorder %s72, %s74
      %p78 = scmp.eq.s32.totalorder %s17, 0
      %p79 = por %p77, %p78
      %p80 = scmp.ne.s32.totalorder %s72, %s74
      %p81 = scmp.eq.s32.totalorder %s22, 1
      %p82 = por %p80, %p81
      %p83 = scmp.ne.s32.totalorder %s74, %s75
      %p84 = scmp.eq.s32.totalorder %s22, 0
      %p85 = por %p83, %p84
      %p86 = scmp.ne.s32.totalorder %s74, %s75
      %p87 = scmp.eq.s32.totalorder %s23, 1
      %p88 = por %p86, %p87
      %p90 = scmp.ne.s32.totalorder %s75, %s89
      %p91 = scmp.eq.s32.totalorder %s23, 0
      %p92 = por %p90, %p91
      %s94 = sadd.s32 %s93, 1
      %p97 = scmp.eq.s32.totalorder %s17, 1
      %p98 = scmp.ne.s32.totalorder %s93, %s95
      %p99 = scmp.eq.s32.totalorder %s17, 0
      %p100 = por %p98, %p99
      %p101 = scmp.ne.s32.totalorder %s93, %s95
      %p102 = scmp.eq.s32.totalorder %s22, 1
      %p103 = por %p101, %p102
      %p104 = scmp.ne.s32.totalorder %s95, %s96
      %p105 = scmp.eq.s32.totalorder %s22, 0
      %p106 = por %p104, %p105
      %p107 = scmp.ne.s32.totalorder %s95, %s96
      %p108 = scmp.eq.s32.totalorder %s23, 1
      %p109 = por %p107, %p108
      %p111 = scmp.ne.s32.totalorder %s96, %s110
      %p112 = scmp.eq.s32.totalorder %s23, 0
      %p113 = por %p111, %p112
      %s114 = ssub.s32 %s17, %s24
      %p115 = scmp.eq.s32.totalorder %s114, 0
      %s117 = sadd.s32 %s116, 1
      %s118 = scalar_select %p115, %s116, %s117
      %p121 = pneg %p115
      %p122 = scmp.eq.s32.totalorder %s17, 1
      %p123 = por %p121, %p122
      %p124 = scmp.ne.s32.totalorder %s116, %s119
      %p125 = scmp.eq.s32.totalorder %s17, 0
      %p126 = por %p124, %p125
      %p127 = scmp.ne.s32.totalorder %s116, %s119
      %p128 = scmp.eq.s32.totalorder %s22, 1
      %p129 = por %p127, %p128
      %p130 = scmp.ne.s32.totalorder %s119, %s120
      %p131 = scmp.eq.s32.totalorder %s22, 0
      %p132 = por %p130, %p131
      %p133 = scmp.ne.s32.totalorder %s119, %s120
      %p134 = scmp.eq.s32.totalorder %s23, 1
      %p135 = por %p133, %p134
      %p137 = scmp.ne.s32.totalorder %s120, %s136
      %p138 = scmp.eq.s32.totalorder %s23, 0
      %p139 = por %p137, %p138
      %p140 = scmp.le.s32.totalorder 1, %s17
      %p141 = scmp.lt.s32.totalorder %s17, 3
      %p142 = pnand %p140, %p141
      %p143 = pneg %p142
      // Predicated region
      $region9: #{tpu_custom_call.1} parent=5 // pred_check
        _
      $region10: #{tpu_custom_call.1} parent=5 // pred_check_branch
        %145 = sbr.rel (%p142) target = $region12
      $region11: #{tpu_custom_call.1} parent=5 // pred_region
        %s146 = ssub.s32 %s17, 1
        // Predicated region
        $region13: #{tpu_custom_call.1} parent=11 // pred_check
          %p147 = pneg %p64
        $region14: #{tpu_custom_call.1} parent=11 // pred_check_branch
          %149 = sbr.rel (%p147) target = $region16
        $region15: #{tpu_custom_call.1} parent=11 // pred_region
          %s151 = ssub.s32 3072, 3072
          %152 = vsyncadd [#allocation6], %s151
          %s153 = sshll.u32 [#allocation5], 4
          %s154 = int_to_ptr.vmem [resolvable:$true] %s153
          %159 = dma.hbm_to_vmem [thread:$0]  %s1, 3072, %s154, [#allocation6], 64, 64, 4
        $region16: #{tpu_custom_call.1} parent=11 // pred_fallthru
          _
        // Predicated region
        $region17: #{tpu_custom_call.1} parent=11 // pred_check
          %p160 = pneg %p85
        $region18: #{tpu_custom_call.1} parent=11 // pred_check_branch
          %162 = sbr.rel (%p160) target = $region20
        $region19: #{tpu_custom_call.1} parent=11 // pred_region
          %s164 = ssub.s32 3072, 3072
          %165 = vsyncadd [#allocation6], %s164
          %s166 = sshll.u32 [#allocation7], 4
          %s167 = int_to_ptr.vmem [resolvable:$true] %s166
          %172 = dma.hbm_to_vmem [thread:$0]  %s2, 3072, %s167, [#allocation6], 64, 64, 4
        $region20: #{tpu_custom_call.1} parent=11 // pred_fallthru
          _
        // Predicated region
        $region21: #{tpu_custom_call.1} parent=11 // pred_check
          %p173 = pneg %p106
        $region22: #{tpu_custom_call.1} parent=11 // pred_check_branch
          %175 = sbr.rel (%p173) target = $region24
        $region23: #{tpu_custom_call.1} parent=11 // pred_region
          _
        $region24: #{tpu_custom_call.1} parent=11 // pred_fallthru
          _
      $region12: #{tpu_custom_call.1} parent=5 // pred_fallthru
        _
      %p176 = scmp.lt.s32.totalorder %s17, 2
      // Predicated region
      $region25: #{tpu_custom_call.1} parent=5 // pred_check
        %p177 = pneg %p176
      $region26: #{tpu_custom_call.1} parent=5 // pred_check_branch
        %179 = sbr.rel (%p177) target = $region28
      $region27: #{tpu_custom_call.1} parent=5 // pred_region
        // Predicated region
        $region29: #{tpu_custom_call.1} parent=27 // pred_check
          %p180 = pneg %p37
        $region30: #{tpu_custom_call.1} parent=27 // pred_check_branch
          %182 = sbr.rel (%p180) target = $region32
        $region31: #{tpu_custom_call.1} parent=27 // pred_region
          %s183 = sand.u32 %s27, 1
          %s184 = scalar_lea.sflag [#allocation3], %s183
          %s185 = sand.u32 %s27, 1
          %s186 = smul.addr %s185, 128
          %s187 = scalar_lea.vmem [#allocation2], %s186
          %s188 = smul.u32 16, %s17
          %s190 = ssub.s32 2048, 2048
          %191 = vsyncadd %s184, %s190
          %s192 = smul.addr %s188, 128
          %s193 = scalar_lea.hbm %s0, %s192
          %s194 = sshll.u32 %s187, 4
          %s195 = int_to_ptr.vmem [resolvable:$true] %s194
          %200 = dma.hbm_to_vmem [thread:$0]  %s193, 2048, %s195, %s184, 128, 128, 8
        $region32: #{tpu_custom_call.1} parent=27 // pred_fallthru
          _
      $region28: #{tpu_custom_call.1} parent=5 // pred_fallthru
        _
      %p201 = scmp.le.s32.totalorder 1, %s17
      %p202 = scmp.lt.s32.totalorder %s17, 3
      %p203 = pnand %p201, %p202
      %p204 = pneg %p203
      // Predicated region
      $region33: #{tpu_custom_call.1} parent=5 // pred_check
        _
      $region34: #{tpu_custom_call.1} parent=5 // pred_check_branch
        %206 = sbr.rel (%p203) target = $region36
      $region35: #{tpu_custom_call.1} parent=5 // pred_region
        %s207 = ssub.s32 %s17, 1
        %s208 = sand.u32 %s30, 1
        %s209 = scalar_lea.sflag [#allocation3], %s208
        %s210 = sand.u32 %s30, 1
        %s211 = smul.addr %s210, 128
        %s212 = scalar_lea.vmem [#allocation2], %s211
        // Predicated region
        $region37: #{tpu_custom_call.1} parent=35 // pred_check
          %p213 = pneg %p43
        $region38: #{tpu_custom_call.1} parent=35 // pred_check_branch
          %215 = sbr.rel (%p213) target = $region40
        $region39: #{tpu_custom_call.1} parent=35 // pred_region
          %216 = dma.done %s209, 2048
        $region40: #{tpu_custom_call.1} parent=35 // pred_fallthru
          _
        // Predicated region
        $region41: #{tpu_custom_call.1} parent=35 // pred_check
          %p217 = pneg %p64
        $region42: #{tpu_custom_call.1} parent=35 // pred_check_branch
          %219 = sbr.rel (%p217) target = $region44
        $region43: #{tpu_custom_call.1} parent=35 // pred_region
          %220 = dma.done [#allocation6], 3072
        $region44: #{tpu_custom_call.1} parent=35 // pred_fallthru
          _
        // Predicated region
        $region45: #{tpu_custom_call.1} parent=35 // pred_check
          %p221 = pneg %p85
        $region46: #{tpu_custom_call.1} parent=35 // pred_check_branch
          %223 = sbr.rel (%p221) target = $region48
        $region47: #{tpu_custom_call.1} parent=35 // pred_region
          %224 = dma.done [#allocation6], 3072
        $region48: #{tpu_custom_call.1} parent=35 // pred_fallthru
          _
        %s225 = sand.u32 %s30, 1
        %s226 = scalar_lea.sflag [#allocation3], %s225
        %s227 = sand.u32 %s30, 1
        %s228 = smul.addr %s227, 128
        %s229 = scalar_lea.vmem [#allocation2], %s228
        %p230 = pneg %p43
        %p231 = pneg %p40
        %p232 = pneg %p64
        %p233 = pneg %p61
        %p234 = pneg %p85
        %p235 = pneg %p82
        %p236 = pneg %p106
        %p237 = pneg %p103
        %p238 = pneg %p132
        %p239 = pneg %p129
        %s240 = sand.u32 %s119, 1
        %s241 = scalar_lea.sflag [#allocation4], %s240
        %s242 = sand.u32 %s119, 1
        %s243 = smul.addr %s242, 128
        %s244 = scalar_lea.vmem [#allocation8], %s243
        %s245 = smul.u32 16, %s22
        %s246 = smul.u32 16, %s22
        %v248 = vld [vmem:[%s212] sm:$0xff]
        %v249 = vld [vmem:[%s212 + $0x8] sm:$0xff]
        %v250 = vld [vmem:[%s212 + $0x10] sm:$0xff]
        %v251 = vld [vmem:[%s212 + $0x18] sm:$0xff]
        %v252 = vld [vmem:[%s212 + $0x20] sm:$0xff]
        %v253 = vld [vmem:[%s212 + $0x28] sm:$0xff]
        %v254 = vld [vmem:[%s212 + $0x30] sm:$0xff]
        %v255 = vld [vmem:[%s212 + $0x38] sm:$0xff]
        %v256 = vld [vmem:[%s212 + $0x40] sm:$0xff]
        %v257 = vld [vmem:[%s212 + $0x48] sm:$0xff]
        %v258 = vld [vmem:[%s212 + $0x50] sm:$0xff]
        %v259 = vld [vmem:[%s212 + $0x58] sm:$0xff]
        %v260 = vld [vmem:[%s212 + $0x60] sm:$0xff]
        %v261 = vld [vmem:[%s212 + $0x68] sm:$0xff]
        %v262 = vld [vmem:[%s212 + $0x70] sm:$0xff]
        %v263 = vld [vmem:[%s212 + $0x78] sm:$0xff]
        %v264 = vld [vmem:[%s3] sm:$0x3]
        %v265 = vlaneseq
        %v266 = vshrl.u32 %v265, 7
        %v267 = vadd.s32 %v266, 8
        %v268 = vadd.s32 %v266, 16
        %v269 = vadd.s32 %v266, 24
        %v270 = vadd.s32 %v266, 32
        %v271 = vadd.s32 %v266, 40
        %v272 = vadd.s32 %v266, 48
        %v273 = vadd.s32 %v266, 56
        %v274 = vadd.s32 %v266, 64
        %v275 = vadd.s32 %v266, 72
        %v276 = vadd.s32 %v266, 80
        %v277 = vadd.s32 %v266, 88
        %v278 = vadd.s32 %v266, 96
        %v279 = vadd.s32 %v266, 104
        %v280 = vadd.s32 %v266, 112
        %v281 = vadd.s32 %v266, 120
        %vm282 = vcmp.lt.s32.totalorder %v266, 0
        %v283 = vsub.s32 0, %v266
        %v284 = vsel %vm282, %v283, %v266
        %v285 = vshrl.u32 %v284, 4
        %v286 = vand.u32 %v284, 15
        %v287 = vsub.s32 0, %v286
        %v288 = vsel %vm282, %v287, %v286
        %vm289 = vcmp.lt.s32.totalorder %v267, 0
        %v290 = vsub.s32 0, %v267
        %v291 = vsel %vm289, %v290, %v267
        %v292 = vshrl.u32 %v291, 4
        %v293 = vand.u32 %v291, 15
        %v294 = vsub.s32 0, %v293
        %v295 = vsel %vm289, %v294, %v293
        %vm296 = vcmp.lt.s32.totalorder %v268, 0
        %v297 = vsub.s32 0, %v268
        %v298 = vsel %vm296, %v297, %v268
        %v299 = vshrl.u32 %v298, 4
        %v300 = vand.u32 %v298, 15
        %v301 = vsub.s32 0, %v300
        %v302 = vsel %vm296, %v301, %v300
        %vm303 = vcmp.lt.s32.totalorder %v269, 0
        %v304 = vsub.s32 0, %v269
        %v305 = vsel %vm303, %v304, %v269
        %v306 = vshrl.u32 %v305, 4
        %v307 = vand.u32 %v305, 15
        %v308 = vsub.s32 0, %v307
        %v309 = vsel %vm303, %v308, %v307
        %vm310 = vcmp.lt.s32.totalorder %v270, 0
        %v311 = vsub.s32 0, %v270
        %v312 = vsel %vm310, %v311, %v270
        %v313 = vshrl.u32 %v312, 4
        %v314 = vand.u32 %v312, 15
        %v315 = vsub.s32 0, %v314
        %v316 = vsel %vm310, %v315, %v314
        %vm317 = vcmp.lt.s32.totalorder %v271, 0
        %v318 = vsub.s32 0, %v271
        %v319 = vsel %vm317, %v318, %v271
        %v320 = vshrl.u32 %v319, 4
        %v321 = vand.u32 %v319, 15
        %v322 = vsub.s32 0, %v321
        %v323 = vsel %vm317, %v322, %v321
        %vm324 = vcmp.lt.s32.totalorder %v272, 0
        %v325 = vsub.s32 0, %v272
        %v326 = vsel %vm324, %v325, %v272
        %v327 = vshrl.u32 %v326, 4
        %v328 = vand.u32 %v326, 15
        %v329 = vsub.s32 0, %v328
        %v330 = vsel %vm324, %v329, %v328
        %vm331 = vcmp.lt.s32.totalorder %v273, 0
        %v332 = vsub.s32 0, %v273
        %v333 = vsel %vm331, %v332, %v273
        %v334 = vshrl.u32 %v333, 4
        %v335 = vand.u32 %v333, 15
        %v336 = vsub.s32 0, %v335
        %v337 = vsel %vm331, %v336, %v335
        %vm338 = vcmp.lt.s32.totalorder %v274, 0
        %v339 = vsub.s32 0, %v274
        %v340 = vsel %vm338, %v339, %v274
        %v341 = vshrl.u32 %v340, 4
        %v342 = vand.u32 %v340, 15
        %v343 = vsub.s32 0, %v342
        %v344 = vsel %vm338, %v343, %v342
        %vm345 = vcmp.lt.s32.totalorder %v275, 0
        %v346 = vsub.s32 0, %v275
        %v347 = vsel %vm345, %v346, %v275
        %v348 = vshrl.u32 %v347, 4
        %v349 = vand.u32 %v347, 15
        %v350 = vsub.s32 0, %v349
        %v351 = vsel %vm345, %v350, %v349
        %vm352 = vcmp.lt.s32.totalorder %v276, 0
        %v353 = vsub.s32 0, %v276
        %v354 = vsel %vm352, %v353, %v276
        %v355 = vshrl.u32 %v354, 4
        %v356 = vand.u32 %v354, 15
        %v357 = vsub.s32 0, %v356
        %v358 = vsel %vm352, %v357, %v356
        %vm359 = vcmp.lt.s32.totalorder %v277, 0
        %v360 = vsub.s32 0, %v277
        %v361 = vsel %vm359, %v360, %v277
        %v362 = vshrl.u32 %v361, 4
        %v363 = vand.u32 %v361, 15
        %v364 = vsub.s32 0, %v363
        %v365 = vsel %vm359, %v364, %v363
        %vm366 = vcmp.lt.s32.totalorder %v278, 0
        %v367 = vsub.s32 0, %v278
        %v368 = vsel %vm366, %v367, %v278
        %v369 = vshrl.u32 %v368, 4
        %v370 = vand.u32 %v368, 15
        %v371 = vsub.s32 0, %v370
        %v372 = vsel %vm366, %v371, %v370
        %vm373 = vcmp.lt.s32.totalorder %v279, 0
        %v374 = vsub.s32 0, %v279
        %v375 = vsel %vm373, %v374, %v279
        %v376 = vshrl.u32 %v375, 4
        %v377 = vand.u32 %v375, 15
        %v378 = vsub.s32 0, %v377
        %v379 = vsel %vm373, %v378, %v377
        %vm380 = vcmp.lt.s32.totalorder %v280, 0
        %v381 = vsub.s32 0, %v280
        %v382 = vsel %vm380, %v381, %v280
        %v383 = vshrl.u32 %v382, 4
        %v384 = vand.u32 %v382, 15
        %v385 = vsub.s32 0, %v384
        %v386 = vsel %vm380, %v385, %v384
        %vm387 = vcmp.lt.s32.totalorder %v281, 0
        %v388 = vsub.s32 0, %v281
        %v389 = vsel %vm387, %v388, %v281
        %v390 = vshrl.u32 %v389, 4
        %v391 = vand.u32 %v389, 15
        %v392 = vsub.s32 0, %v391
        %v393 = vsel %vm387, %v392, %v391
        %vm394 = vcmp.ne.s32.totalorder %v288, 0
        %vm395 = vcmp.ne.s32.totalorder %v295, 0
        %vm396 = vcmp.ne.s32.totalorder %v302, 0
        %vm397 = vcmp.ne.s32.totalorder %v309, 0
        %vm398 = vcmp.ne.s32.totalorder %v316, 0
        %vm399 = vcmp.ne.s32.totalorder %v323, 0
        %vm400 = vcmp.ne.s32.totalorder %v330, 0
        %vm401 = vcmp.ne.s32.totalorder %v337, 0
        %vm402 = vcmp.ne.s32.totalorder %v344, 0
        %vm403 = vcmp.ne.s32.totalorder %v351, 0
        %vm404 = vcmp.ne.s32.totalorder %v358, 0
        %vm405 = vcmp.ne.s32.totalorder %v365, 0
        %vm406 = vcmp.ne.s32.totalorder %v372, 0
        %vm407 = vcmp.ne.s32.totalorder %v379, 0
        %vm408 = vcmp.ne.s32.totalorder %v386, 0
        %vm409 = vcmp.ne.s32.totalorder %v393, 0
        %vm410 = vcmp.lt.s32.totalorder %v288, 0
        %vm411 = vcmp.lt.s32.totalorder %v295, 0
        %vm412 = vcmp.lt.s32.totalorder %v302, 0
        %vm413 = vcmp.lt.s32.totalorder %v309, 0
        %vm414 = vcmp.lt.s32.totalorder %v316, 0
        %vm415 = vcmp.lt.s32.totalorder %v323, 0
        %vm416 = vcmp.lt.s32.totalorder %v330, 0
        %vm417 = vcmp.lt.s32.totalorder %v337, 0
        %vm418 = vcmp.lt.s32.totalorder %v344, 0
        %vm419 = vcmp.lt.s32.totalorder %v351, 0
        %vm420 = vcmp.lt.s32.totalorder %v358, 0
        %vm421 = vcmp.lt.s32.totalorder %v365, 0
        %vm422 = vcmp.lt.s32.totalorder %v372, 0
        %vm423 = vcmp.lt.s32.totalorder %v379, 0
        %vm424 = vcmp.lt.s32.totalorder %v386, 0
        %vm425 = vcmp.lt.s32.totalorder %v393, 0
        %vm426 = vmand %vm410, %vm394
        %vm427 = vmand %vm411, %vm395
        %vm428 = vmand %vm412, %vm396
        %vm429 = vmand %vm413, %vm397
        %vm430 = vmand %vm414, %vm398
        %vm431 = vmand %vm415, %vm399
        %vm432 = vmand %vm416, %vm400
        %vm433 = vmand %vm417, %vm401
        %vm434 = vmand %vm418, %vm402
        %vm435 = vmand %vm419, %vm403
        %vm436 = vmand %vm420, %vm404
        %vm437 = vmand %vm421, %vm405
        %vm438 = vmand %vm422, %vm406
        %vm439 = vmand %vm423, %vm407
        %vm440 = vmand %vm424, %vm408
        %vm441 = vmand %vm425, %vm409
        %v442 = vadd.s32 %v288, 16
        %v443 = vadd.s32 %v295, 16
        %v444 = vadd.s32 %v302, 16
        %v445 = vadd.s32 %v309, 16
        %v446 = vadd.s32 %v316, 16
        %v447 = vadd.s32 %v323, 16
        %v448 = vadd.s32 %v330, 16
        %v449 = vadd.s32 %v337, 16
        %v450 = vadd.s32 %v344, 16
        %v451 = vadd.s32 %v351, 16
        %v452 = vadd.s32 %v358, 16
        %v453 = vadd.s32 %v365, 16
        %v454 = vadd.s32 %v372, 16
        %v455 = vadd.s32 %v379, 16
        %v456 = vadd.s32 %v386, 16
        %v457 = vadd.s32 %v393, 16
        %v458 = vsel %vm426, %v442, %v288
        %v459 = vsel %vm427, %v443, %v295
        %v460 = vsel %vm428, %v444, %v302
        %v461 = vsel %vm429, %v445, %v309
        %v462 = vsel %vm430, %v446, %v316
        %v463 = vsel %vm431, %v447, %v323
        %v464 = vsel %vm432, %v448, %v330
        %v465 = vsel %vm433, %v449, %v337
        %v466 = vsel %vm434, %v450, %v344
        %v467 = vsel %vm435, %v451, %v351
        %v468 = vsel %vm436, %v452, %v358
        %v469 = vsel %vm437, %v453, %v365
        %v470 = vsel %vm438, %v454, %v372
        %v471 = vsel %vm439, %v455, %v379
        %v472 = vsel %vm440, %v456, %v386
        %v473 = vsel %vm441, %v457, %v393
        %vm474 = vcmp.ne.s32.totalorder %v458, 0
        %vm475 = vcmp.ne.s32.totalorder %v459, 0
        %vm476 = vcmp.ne.s32.totalorder %v460, 0
        %vm477 = vcmp.ne.s32.totalorder %v461, 0
        %vm478 = vcmp.ne.s32.totalorder %v462, 0
        %vm479 = vcmp.ne.s32.totalorder %v463, 0
        %vm480 = vcmp.ne.s32.totalorder %v464, 0
        %vm481 = vcmp.ne.s32.totalorder %v465, 0
        %vm482 = vcmp.ne.s32.totalorder %v466, 0
        %vm483 = vcmp.ne.s32.totalorder %v467, 0
        %vm484 = vcmp.ne.s32.totalorder %v468, 0
        %vm485 = vcmp.ne.s32.totalorder %v469, 0
        %vm486 = vcmp.ne.s32.totalorder %v470, 0
        %vm487 = vcmp.ne.s32.totalorder %v471, 0
        %vm488 = vcmp.ne.s32.totalorder %v472, 0
        %vm489 = vcmp.ne.s32.totalorder %v473, 0
        %vm490 = vcmp.ne.s32.totalorder %v458, 15
        %vm491 = vcmp.ne.s32.totalorder %v459, 15
        %vm492 = vcmp.ne.s32.totalorder %v460, 15
        %vm493 = vcmp.ne.s32.totalorder %v461, 15
        %vm494 = vcmp.ne.s32.totalorder %v462, 15
        %vm495 = vcmp.ne.s32.totalorder %v463, 15
        %vm496 = vcmp.ne.s32.totalorder %v464, 15
        %vm497 = vcmp.ne.s32.totalorder %v465, 15
        %vm498 = vcmp.ne.s32.totalorder %v466, 15
        %vm499 = vcmp.ne.s32.totalorder %v467, 15
        %vm500 = vcmp.ne.s32.totalorder %v468, 15
        %vm501 = vcmp.ne.s32.totalorder %v469, 15
        %vm502 = vcmp.ne.s32.totalorder %v470, 15
        %vm503 = vcmp.ne.s32.totalorder %v471, 15
        %vm504 = vcmp.ne.s32.totalorder %v472, 15
        %vm505 = vcmp.ne.s32.totalorder %v473, 15
        %v506 = vrot.slane %v248, 7
        %v507 = vrot.slane %v249, 7
        %v508 = vrot.slane %v250, 7
        %v509 = vrot.slane %v251, 7
        %v510 = vrot.slane %v252, 7
        %v511 = vrot.slane %v253, 7
        %v512 = vrot.slane %v254, 7
        %v513 = vrot.slane %v255, 7
        %v514 = vrot.slane %v256, 7
        %v515 = vrot.slane %v257, 7
        %v516 = vrot.slane %v258, 7
        %v517 = vrot.slane %v259, 7
        %v518 = vrot.slane %v260, 7
        %v519 = vrot.slane %v261, 7
        %v520 = vrot.slane %v262, 7
        %v521 = vrot.slane %v263, 7
        %vm522 = vcmp.lt.s32.totalorder %v266, 1
        %v523 = vsel %vm522, %v520, %v521
        %v524 = vsel %vm522, %v519, %v520
        %v525 = vsel %vm522, %v518, %v519
        %v526 = vsel %vm522, %v517, %v518
        %v527 = vsel %vm522, %v516, %v517
        %v528 = vsel %vm522, %v515, %v516
        %v529 = vsel %vm522, %v514, %v515
        %v530 = vsel %vm522, %v513, %v514
        %v531 = vsel %vm522, %v512, %v513
        %v532 = vsel %vm522, %v511, %v512
        %v533 = vsel %vm522, %v510, %v511
        %v534 = vsel %vm522, %v509, %v510
        %v535 = vsel %vm522, %v508, %v509
        %v536 = vsel %vm522, %v507, %v508
        %v537 = vsel %vm522, %v506, %v507
        %v538 = vsel %vm522, %v521, %v506
        %v539 = vsel %vm474, %v538, 0.0
        %v540 = vsel %vm475, %v537, 0.0
        %v541 = vsel %vm476, %v536, 0.0
        %v542 = vsel %vm477, %v535, 0.0
        %v543 = vsel %vm478, %v534, 0.0
        %v544 = vsel %vm479, %v533, 0.0
        %v545 = vsel %vm480, %v532, 0.0
        %v546 = vsel %vm481, %v531, 0.0
        %v547 = vsel %vm482, %v530, 0.0
        %v548 = vsel %vm483, %v529, 0.0
        %v549 = vsel %vm484, %v528, 0.0
        %v550 = vsel %vm485, %v527, 0.0
        %v551 = vsel %vm486, %v526, 0.0
        %v552 = vsel %vm487, %v525, 0.0
        %v553 = vsel %vm488, %v524, 0.0
        %v554 = vsel %vm489, %v523, 0.0
        %v555 = vrot.slane %v248, 1
        %v556 = vrot.slane %v249, 1
        %v557 = vrot.slane %v250, 1
        %v558 = vrot.slane %v251, 1
        %v559 = vrot.slane %v252, 1
        %v560 = vrot.slane %v253, 1
        %v561 = vrot.slane %v254, 1
        %v562 = vrot.slane %v255, 1
        %v563 = vrot.slane %v256, 1
        %v564 = vrot.slane %v257, 1
        %v565 = vrot.slane %v258, 1
        %v566 = vrot.slane %v259, 1
        %v567 = vrot.slane %v260, 1
        %v568 = vrot.slane %v261, 1
        %v569 = vrot.slane %v262, 1
        %v570 = vrot.slane %v263, 1
        %vm571 = vcmp.lt.s32.totalorder %v266, 7
        %v572 = vsel %vm571, %v569, %v570
        %v573 = vsel %vm571, %v568, %v569
        %v574 = vsel %vm571, %v567, %v568
        %v575 = vsel %vm571, %v566, %v567
        %v576 = vsel %vm571, %v565, %v566
        %v577 = vsel %vm571, %v564, %v565
        %v578 = vsel %vm571, %v563, %v564
        %v579 = vsel %vm571, %v562, %v563
        %v580 = vsel %vm571, %v561, %v562
        %v581 = vsel %vm571, %v560, %v561
        %v582 = vsel %vm571, %v559, %v560
        %v583 = vsel %vm571, %v558, %v559
        %v584 = vsel %vm571, %v557, %v558
        %v585 = vsel %vm571, %v556, %v557
        %v586 = vsel %vm571, %v555, %v556
        %v587 = vsel %vm571, %v570, %v555
        %v588 = vsel %vm490, %v586, 0.0
        %v589 = vsel %vm491, %v585, 0.0
        %v590 = vsel %vm492, %v584, 0.0
        %v591 = vsel %vm493, %v583, 0.0
        %v592 = vsel %vm494, %v582, 0.0
        %v593 = vsel %vm495, %v581, 0.0
        %v594 = vsel %vm496, %v580, 0.0
        %v595 = vsel %vm497, %v579, 0.0
        %v596 = vsel %vm498, %v578, 0.0
        %v597 = vsel %vm499, %v577, 0.0
        %v598 = vsel %vm500, %v576, 0.0
        %v599 = vsel %vm501, %v575, 0.0
        %v600 = vsel %vm502, %v574, 0.0
        %v601 = vsel %vm503, %v573, 0.0
        %v602 = vsel %vm504, %v572, 0.0
        %v603 = vsel %vm505, %v587, 0.0
        %v604 = vpack.c.bf16 %v540, %v539
        %v605 = vpack.c.bf16 %v249, %v248
        %v606 = vpack.c.bf16 %v589, %v588
        %v607 = vpack.c.bf16 %v542, %v541
        %v608 = vpack.c.bf16 %v251, %v250
        %v609 = vpack.c.bf16 %v591, %v590
        %v610 = vpack.c.bf16 %v544, %v543
        %v611 = vpack.c.bf16 %v253, %v252
        %v612 = vpack.c.bf16 %v593, %v592
        %v613 = vpack.c.bf16 %v546, %v545
        %v614 = vpack.c.bf16 %v255, %v254
        %v615 = vpack.c.bf16 %v595, %v594
        %v616 = vpack.c.bf16 %v548, %v547
        %v617 = vpack.c.bf16 %v257, %v256
        %v618 = vpack.c.bf16 %v597, %v596
        %v619 = vpack.c.bf16 %v550, %v549
        %v620 = vpack.c.bf16 %v259, %v258
        %v621 = vpack.c.bf16 %v599, %v598
        %v622 = vpack.c.bf16 %v552, %v551
        %v623 = vpack.c.bf16 %v261, %v260
        %v624 = vpack.c.bf16 %v601, %v600
        %v625 = vpack.c.bf16 %v554, %v553
        %v626 = vpack.c.bf16 %v263, %v262
        %v627 = vpack.c.bf16 %v603, %v602
        %v628 = vld [vmem:[#allocation5] sm:$0xf]
        %v629 = vld [vmem:[#allocation5 + $0x4] sm:$0xf]
        %v630 = vld [vmem:[#allocation5 + $0x8] sm:$0xf]
        %v631 = vld [vmem:[#allocation5 + $0xc] sm:$0xf]
        %v632 = vld [vmem:[#allocation5 + $0x10] sm:$0xf]
        %v633 = vld [vmem:[#allocation5 + $0x14] sm:$0xf]
        %v634 = vld [vmem:[#allocation5 + $0x18] sm:$0xf]
        %v635 = vld [vmem:[#allocation5 + $0x1c] sm:$0xf]
        %v636 = vld [vmem:[#allocation5 + $0x20] sm:$0xf]
        %v637 = vld [vmem:[#allocation5 + $0x24] sm:$0xf]
        %v638 = vld [vmem:[#allocation5 + $0x28] sm:$0xf]
        %v639 = vld [vmem:[#allocation5 + $0x2c] sm:$0xf]
        %v640 = vld [vmem:[#allocation5 + $0x30] sm:$0xf]
        %v641 = vld [vmem:[#allocation5 + $0x34] sm:$0xf]
        %v642 = vld [vmem:[#allocation5 + $0x38] sm:$0xf]
        %v643 = vld [vmem:[#allocation5 + $0x3c] sm:$0xf]
        %v644 = vld [vmem:[#allocation5 + $0x40] sm:$0xf]
        %v645 = vld [vmem:[#allocation5 + $0x44] sm:$0xf]
        %v646 = vld [vmem:[#allocation5 + $0x48] sm:$0xf]
        %v647 = vld [vmem:[#allocation5 + $0x4c] sm:$0xf]
        %v648 = vld [vmem:[#allocation5 + $0x50] sm:$0xf]
        %v649 = vld [vmem:[#allocation5 + $0x54] sm:$0xf]
        %v650 = vld [vmem:[#allocation5 + $0x58] sm:$0xf]
        %v651 = vld [vmem:[#allocation5 + $0x5c] sm:$0xf]
        %v652 = vld [vmem:[#allocation5 + $0x60] sm:$0xf]
        %v653 = vld [vmem:[#allocation5 + $0x64] sm:$0xf]
        %v654 = vld [vmem:[#allocation5 + $0x68] sm:$0xf]
        %v655 = vld [vmem:[#allocation5 + $0x6c] sm:$0xf]
        %v656 = vld [vmem:[#allocation5 + $0x70] sm:$0xf]
        %v657 = vld [vmem:[#allocation5 + $0x74] sm:$0xf]
        %v658 = vld [vmem:[#allocation5 + $0x78] sm:$0xf]
        %v659 = vld [vmem:[#allocation5 + $0x7c] sm:$0xf]
        %v660 = vld [vmem:[#allocation5 + $0x80] sm:$0xf]
        %v661 = vld [vmem:[#allocation5 + $0x84] sm:$0xf]
        %v662 = vld [vmem:[#allocation5 + $0x88] sm:$0xf]
        %v663 = vld [vmem:[#allocation5 + $0x8c] sm:$0xf]
        %v664 = vld [vmem:[#allocation5 + $0x90] sm:$0xf]
        %v665 = vld [vmem:[#allocation5 + $0x94] sm:$0xf]
        %v666 = vld [vmem:[#allocation5 + $0x98] sm:$0xf]
        %v667 = vld [vmem:[#allocation5 + $0x9c] sm:$0xf]
        %v668 = vld [vmem:[#allocation5 + $0xa0] sm:$0xf]
        %v669 = vld [vmem:[#allocation5 + $0xa4] sm:$0xf]
        %v670 = vld [vmem:[#allocation5 + $0xa8] sm:$0xf]
        %v671 = vld [vmem:[#allocation5 + $0xac] sm:$0xf]
        %v672 = vld [vmem:[#allocation5 + $0xb0] sm:$0xf]
        %v673 = vld [vmem:[#allocation5 + $0xb4] sm:$0xf]
        %v674 = vld [vmem:[#allocation5 + $0xb8] sm:$0xf]
        %v675 = vld [vmem:[#allocation5 + $0xbc] sm:$0xf]
        %v676 = vlaneseq
        %v677 = vshrl.u32 %v676, 7
        %v678 = vsub.s32 0, %v677
        %v679 = vrot.slane %v264, %v678
        %v728 = vunpack.c.l.b16 %v628
        %v729 = vunpack.c.l.b16 %v629
        %v730 = vunpack.c.l.b16 %v630
        %v731 = vunpack.c.l.b16 %v631
        %v732 = vunpack.c.l.b16 %v632
        %v733 = vunpack.c.l.b16 %v633
        %v734 = vunpack.c.l.b16 %v634
        %v735 = vunpack.c.l.b16 %v635
        %v736 = vunpack.c.l.b16 %v636
        %v737 = vunpack.c.l.b16 %v637
        %v738 = vunpack.c.l.b16 %v638
        %v739 = vunpack.c.l.b16 %v639
        %v740 = vunpack.c.l.b16 %v640
        %v741 = vunpack.c.l.b16 %v641
        %v742 = vunpack.c.l.b16 %v642
        %v743 = vunpack.c.l.b16 %v643
        %v744 = vunpack.c.l.b16 %v644
        %v745 = vunpack.c.l.b16 %v645
        %v746 = vunpack.c.l.b16 %v646
        %v747 = vunpack.c.l.b16 %v647
        %v748 = vunpack.c.l.b16 %v648
        %v749 = vunpack.c.l.b16 %v649
        %v750 = vunpack.c.l.b16 %v650
        %v751 = vunpack.c.l.b16 %v651
        %v752 = vunpack.c.l.b16 %v652
        %v753 = vunpack.c.l.b16 %v653
        %v754 = vunpack.c.l.b16 %v654
        %v755 = vunpack.c.l.b16 %v655
        %v756 = vunpack.c.l.b16 %v656
        %v757 = vunpack.c.l.b16 %v657
        %v758 = vunpack.c.l.b16 %v658
        %v759 = vunpack.c.l.b16 %v659
        %v760 = vunpack.c.l.b16 %v660
        %v761 = vunpack.c.l.b16 %v661
        %v762 = vunpack.c.l.b16 %v662
        %v763 = vunpack.c.l.b16 %v663
        %v764 = vunpack.c.l.b16 %v664
        %v765 = vunpack.c.l.b16 %v665
        %v766 = vunpack.c.l.b16 %v666
        %v767 = vunpack.c.l.b16 %v667
        %v768 = vunpack.c.l.b16 %v668
        %v769 = vunpack.c.l.b16 %v669
        %v770 = vunpack.c.l.b16 %v670
        %v771 = vunpack.c.l.b16 %v671
        %v772 = vunpack.c.l.b16 %v672
        %v773 = vunpack.c.l.b16 %v673
        %v774 = vunpack.c.l.b16 %v674
        %v775 = vunpack.c.l.b16 %v675
        %v776 = vpack.c.b16 %v729, %v728
        %v777 = vpack.c.b16 %v731, %v730
        %v778 = vpack.c.b16 %v733, %v732
        %v779 = vpack.c.b16 %v735, %v734
        %v780 = vpack.c.b16 %v737, %v736
        %v781 = vpack.c.b16 %v739, %v738
        %v782 = vpack.c.b16 %v741, %v740
        %v783 = vpack.c.b16 %v743, %v742
        %v784 = vpack.c.b16 %v745, %v744
        %v785 = vpack.c.b16 %v747, %v746
        %v786 = vpack.c.b16 %v749, %v748
        %v787 = vpack.c.b16 %v751, %v750
        %v788 = vpack.c.b16 %v753, %v752
        %v789 = vpack.c.b16 %v755, %v754
        %v790 = vpack.c.b16 %v757, %v756
        %v791 = vpack.c.b16 %v759, %v758
        %v792 = vpack.c.b16 %v761, %v760
        %v793 = vpack.c.b16 %v763, %v762
        %v794 = vpack.c.b16 %v765, %v764
        %v795 = vpack.c.b16 %v767, %v766
        %v796 = vpack.c.b16 %v769, %v768
        %v797 = vpack.c.b16 %v771, %v770
        %v798 = vpack.c.b16 %v773, %v772
        %v799 = vpack.c.b16 %v775, %v774
        %824 = vmatprep.subr.bf16.mxu0 0
        %825 = vmatpush1.bf16.msra.mxu0 %v776
        %826 = vmatprep.subr.bf16.mxu0 0
        %827 = vmatpush1.bf16.msra.mxu0 %v777
        %828 = vmatprep.subr.bf16.mxu0 0
        %829 = vmatpush1.bf16.msra.mxu0 %v778
        %830 = vmatprep.subr.bf16.mxu0 0
        %831 = vmatpush1.bf16.msra.mxu0 %v779
        %832 = vmatprep.subr.bf16.mxu0 0
        %833 = vmatpush1.bf16.msra.mxu0 %v780
        %834 = vmatprep.subr.bf16.mxu0 0
        %835 = vmatpush1.bf16.msra.mxu0 %v781
        %836 = vmatprep.subr.bf16.mxu0 0
        %837 = vmatpush1.bf16.msra.mxu0 %v782
        %838 = vmatprep.subr.bf16.mxu0 0
        %839 = vmatpush1.bf16.msra.mxu0 %v783
        %840 = vmatprep.subr.bf16.mxu0 0
        %841 = vmatpush1.bf16.msra.mxu0 %v784
        %842 = vmatprep.subr.bf16.mxu0 0
        %843 = vmatpush1.bf16.msra.mxu0 %v785
        %844 = vmatprep.subr.bf16.mxu0 0
        %845 = vmatpush1.bf16.msra.mxu0 %v786
        %846 = vmatprep.subr.bf16.mxu0 0
        %847 = vmatpush1.bf16.msra.mxu0 %v787
        %848 = vmatprep.subr.bf16.mxu0 0
        %849 = vmatpush1.bf16.msra.mxu0 %v788
        %850 = vmatprep.subr.bf16.mxu0 0
        %851 = vmatpush1.bf16.msra.mxu0 %v789
        %852 = vmatprep.subr.bf16.mxu0 0
        %853 = vmatpush1.bf16.msra.mxu0 %v790
        %854 = vmatprep.subr.bf16.mxu0 0
        %855 = vmatpush1.bf16.msra.mxu0 %v791
        %856 = vmatprep.mubr.bf16.mxu0 %v605
        %857 = vmatmul.mubr.bf16.gmra.mrb[0].mxu0 %v604
        %v858 = vpop.f32.mrb[0].mxu0
        %v859 = vadd.f32 %v679, %v858
        %v860 = vpop.f32.mrb[0].mxu0
        %v861 = vpop.f32.mrb[0].mxu0
        %v862 = vadd.f32 %v679, %v861
        %v863 = vpop.f32.mrb[0].mxu0
        %864 = vmatprep.mubr.bf16.mxu0 %v608
        %865 = vmatmul.mubr.bf16.gmra.mrb[0].mxu0 %v607
        %v866 = vpop.f32.mrb[0].mxu0
        %v867 = vadd.f32 %v679, %v866
        %v868 = vpop.f32.mrb[0].mxu0
        %v869 = vpop.f32.mrb[0].mxu0
        %v870 = vadd.f32 %v679, %v869
        %v871 = vpop.f32.mrb[0].mxu0
        %872 = vmatprep.mubr.bf16.mxu0 %v611
        %873 = vmatmul.mubr.bf16.gmra.mrb[0].mxu0 %v610
        %v874 = vpop.f32.mrb[0].mxu0
        %v875 = vadd.f32 %v679, %v874
        %v876 = vpop.f32.mrb[0].mxu0
        %v877 = vpop.f32.mrb[0].mxu0
        %v878 = vadd.f32 %v679, %v877
        %v879 = vpop.f32.mrb[0].mxu0
        %880 = vmatprep.mubr.bf16.mxu0 %v614
        %881 = vmatmul.mubr.bf16.gmra.mrb[0].mxu0 %v613
        %v882 = vpop.f32.mrb[0].mxu0
        %v883 = vadd.f32 %v679, %v882
        %v884 = vpop.f32.mrb[0].mxu0
        %v885 = vpop.f32.mrb[0].mxu0
        %v886 = vadd.f32 %v679, %v885
        %v887 = vpop.f32.mrb[0].mxu0
        %888 = vmatprep.mubr.bf16.mxu0 %v617
        %889 = vmatmul.mubr.bf16.gmra.mrb[0].mxu0 %v616
        %v890 = vpop.f32.mrb[0].mxu0
        %v891 = vadd.f32 %v679, %v890
        %v892 = vpop.f32.mrb[0].mxu0
        %v893 = vpop.f32.mrb[0].mxu0
        %v894 = vadd.f32 %v679, %v893
        %v895 = vpop.f32.mrb[0].mxu0
        %896 = vmatprep.mubr.bf16.mxu0 %v620
        %897 = vmatmul.mubr.bf16.gmra.mrb[0].mxu0 %v619
        %v898 = vpop.f32.mrb[0].mxu0
        %v899 = vadd.f32 %v679, %v898
        %v900 = vpop.f32.mrb[0].mxu0
        %v901 = vpop.f32.mrb[0].mxu0
        %v902 = vadd.f32 %v679, %v901
        %v903 = vpop.f32.mrb[0].mxu0
        %904 = vmatprep.mubr.bf16.mxu0 %v623
        %905 = vmatmul.mubr.bf16.gmra.mrb[0].mxu0 %v622
        %v906 = vpop.f32.mrb[0].mxu0
        %v907 = vadd.f32 %v679, %v906
        %v908 = vpop.f32.mrb[0].mxu0
        %v909 = vpop.f32.mrb[0].mxu0
        %v910 = vadd.f32 %v679, %v909
        %v911 = vpop.f32.mrb[0].mxu0
        %912 = vmatprep.mubr.bf16.mxu0 %v626
        %913 = vmatmul.mubr.bf16.gmra.mrb[0].mxu0 %v625
        %v914 = vpop.f32.mrb[0].mxu0
        %v915 = vadd.f32 %v679, %v914
        %v916 = vpop.f32.mrb[0].mxu0
        %v917 = vpop.f32.mrb[0].mxu0
        %v918 = vadd.f32 %v679, %v917
        %v919 = vpop.f32.mrb[0].mxu0
        %920 = vdwg.mxu0
        %921 = vmatprep.subr.bf16.mxu0 0
        %922 = vmatpush1.bf16.msra.mxu0 %v792
        %923 = vmatprep.subr.bf16.mxu0 0
        %924 = vmatpush1.bf16.msra.mxu0 %v793
        %925 = vmatprep.subr.bf16.mxu0 0
        %926 = vmatpush1.bf16.msra.mxu0 %v794
        %927 = vmatprep.subr.bf16.mxu0 0
        %928 = vmatpush1.bf16.msra.mxu0 %v795
        %929 = vmatprep.subr.bf16.mxu0 0
        %930 = vmatpush1.bf16.msra.mxu0 %v796
        %931 = vmatprep.subr.bf16.mxu0 0
        %932 = vmatpush1.bf16.msra.mxu0 %v797
        %933 = vmatprep.subr.bf16.mxu0 0
        %934 = vmatpush1.bf16.msra.mxu0 %v798
        %935 = vmatprep.subr.bf16.mxu0 0
        %936 = vmatpush1.bf16.msra.mxu0 %v799
        %937 = vmatprep.subr.bf16.mxu0 0
        %938 = vmatpush1.bf16.msra.mxu0 0
        %939 = vmatprep.subr.bf16.mxu0 0
        %940 = vmatpush1.bf16.msra.mxu0 0
        %941 = vmatprep.subr.bf16.mxu0 0
        %942 = vmatpush1.bf16.msra.mxu0 0
        %943 = vmatprep.subr.bf16.mxu0 0
        %944 = vmatpush1.bf16.msra.mxu0 0
        %945 = vmatprep.subr.bf16.mxu0 0
        %946 = vmatpush1.bf16.msra.mxu0 0
        %947 = vmatprep.subr.bf16.mxu0 0
        %948 = vmatpush1.bf16.msra.mxu0 0
        %949 = vmatprep.subr.bf16.mxu0 0
        %950 = vmatpush1.bf16.msra.mxu0 0
        %951 = vmatprep.subr.bf16.mxu0 0
        %952 = vmatpush1.bf16.msra.mxu0 0
        %953 = vmatprep.mubr.bf16.mxu0 0
        %954 = vmatmul.mubr.bf16.gmra.mrb[0].mxu0 %v606
        %v955 = vpop.f32.mrb[0].mxu0
        %v956 = vadd.f32 %v859, %v955
        %v957 = vpop.f32.mrb[0].mxu0
        %v958 = vpop.f32.mrb[0].mxu0
        %v959 = vadd.f32 %v862, %v958
        %v960 = vpop.f32.mrb[0].mxu0
        %961 = vmatprep.mubr.bf16.mxu0 0
        %962 = vmatmul.mubr.bf16.gmra.mrb[0].mxu0 %v609
        %v963 = vpop.f32.mrb[0].mxu0
        %v964 = vadd.f32 %v867, %v963
        %v965 = vpop.f32.mrb[0].mxu0
        %v966 = vpop.f32.mrb[0].mxu0
        %v967 = vadd.f32 %v870, %v966
        %v968 = vpop.f32.mrb[0].mxu0
        %969 = vmatprep.mubr.bf16.mxu0 0
        %970 = vmatmul.mubr.bf16.gmra.mrb[0].mxu0 %v612
        %v971 = vpop.f32.mrb[0].mxu0
        %v972 = vadd.f32 %v875, %v971
        %v973 = vpop.f32.mrb[0].mxu0
        %v974 = vpop.f32.mrb[0].mxu0
        %v975 = vadd.f32 %v878, %v974
        %v976 = vpop.f32.mrb[0].mxu0
        %977 = vmatprep.mubr.bf16.mxu0 0
        %978 = vmatmul.mubr.bf16.gmra.mrb[0].mxu0 %v615
        %v979 = vpop.f32.mrb[0].mxu0
        %v980 = vadd.f32 %v883, %v979
        %v981 = vpop.f32.mrb[0].mxu0
        %v982 = vpop.f32.mrb[0].mxu0
        %v983 = vadd.f32 %v886, %v982
        %v984 = vpop.f32.mrb[0].mxu0
        %985 = vmatprep.mubr.bf16.mxu0 0
        %986 = vmatmul.mubr.bf16.gmra.mrb[0].mxu0 %v618
        %v987 = vpop.f32.mrb[0].mxu0
        %v988 = vadd.f32 %v891, %v987
        %v989 = vpop.f32.mrb[0].mxu0
        %v990 = vpop.f32.mrb[0].mxu0
        %v991 = vadd.f32 %v894, %v990
        %v992 = vpop.f32.mrb[0].mxu0
        %993 = vmatprep.mubr.bf16.mxu0 0
        %994 = vmatmul.mubr.bf16.gmra.mrb[0].mxu0 %v621
        %v995 = vpop.f32.mrb[0].mxu0
        %v996 = vadd.f32 %v899, %v995
        %v997 = vpop.f32.mrb[0].mxu0
        %v998 = vpop.f32.mrb[0].mxu0
        %v999 = vadd.f32 %v902, %v998
        %v1000 = vpop.f32.mrb[0].mxu0
        %1001 = vmatprep.mubr.bf16.mxu0 0
        %1002 = vmatmul.mubr.bf16.gmra.mrb[0].mxu0 %v624
        %v1003 = vpop.f32.mrb[0].mxu0
        %v1004 = vadd.f32 %v907, %v1003
        %v1005 = vpop.f32.mrb[0].mxu0
        %v1006 = vpop.f32.mrb[0].mxu0
        %v1007 = vadd.f32 %v910, %v1006
        %v1008 = vpop.f32.mrb[0].mxu0
        %1009 = vmatprep.mubr.bf16.mxu0 0
        %1010 = vmatmul.mubr.bf16.gmra.mrb[0].mxu0 %v627
        %v1011 = vpop.f32.mrb[0].mxu0
        %v1012 = vadd.f32 %v915, %v1011
        %v1013 = vpop.f32.mrb[0].mxu0
        %v1014 = vpop.f32.mrb[0].mxu0
        %v1015 = vadd.f32 %v918, %v1014
        %v1016 = vpop.f32.mrb[0].mxu0
        %1017 = vdwg.mxu0
        %v1018 = vmax.f32 %v956, 0.0
        %v1019 = vmax.f32 %v959, 0.0
        %v1020 = vmax.f32 %v964, 0.0
        %v1021 = vmax.f32 %v967, 0.0
        %v1022 = vmax.f32 %v972, 0.0
        %v1023 = vmax.f32 %v975, 0.0
        %v1024 = vmax.f32 %v980, 0.0
        %v1025 = vmax.f32 %v983, 0.0
        %v1026 = vmax.f32 %v988, 0.0
        %v1027 = vmax.f32 %v991, 0.0
        %v1028 = vmax.f32 %v996, 0.0
        %v1029 = vmax.f32 %v999, 0.0
        %v1030 = vmax.f32 %v1004, 0.0
        %v1031 = vmax.f32 %v1007, 0.0
        %v1032 = vmax.f32 %v1012, 0.0
        %v1033 = vmax.f32 %v1015, 0.0
        %v1034 = vrot.slane %v1018, 7
        %v1035 = vrot.slane %v1019, 7
        %v1036 = vrot.slane %v1020, 7
        %v1037 = vrot.slane %v1021, 7
        %v1038 = vrot.slane %v1022, 7
        %v1039 = vrot.slane %v1023, 7
        %v1040 = vrot.slane %v1024, 7
        %v1041 = vrot.slane %v1025, 7
        %v1042 = vrot.slane %v1026, 7
        %v1043 = vrot.slane %v1027, 7
        %v1044 = vrot.slane %v1028, 7
        %v1045 = vrot.slane %v1029, 7
        %v1046 = vrot.slane %v1030, 7
        %v1047 = vrot.slane %v1031, 7
        %v1048 = vrot.slane %v1032, 7
        %v1049 = vrot.slane %v1033, 7
        %v1050 = vsel %vm522, %v1048, %v1049
        %v1051 = vsel %vm522, %v1047, %v1048
        %v1052 = vsel %vm522, %v1046, %v1047
        %v1053 = vsel %vm522, %v1045, %v1046
        %v1054 = vsel %vm522, %v1044, %v1045
        %v1055 = vsel %vm522, %v1043, %v1044
        %v1056 = vsel %vm522, %v1042, %v1043
        %v1057 = vsel %vm522, %v1041, %v1042
        %v1058 = vsel %vm522, %v1040, %v1041
        %v1059 = vsel %vm522, %v1039, %v1040
        %v1060 = vsel %vm522, %v1038, %v1039
        %v1061 = vsel %vm522, %v1037, %v1038
        %v1062 = vsel %vm522, %v1036, %v1037
        %v1063 = vsel %vm522, %v1035, %v1036
        %v1064 = vsel %vm522, %v1034, %v1035
        %v1065 = vsel %vm522, %v1049, %v1034
        %v1066 = vsel %vm474, %v1065, 0.0
        %v1067 = vsel %vm475, %v1064, 0.0
        %v1068 = vsel %vm476, %v1063, 0.0
        %v1069 = vsel %vm477, %v1062, 0.0
        %v1070 = vsel %vm478, %v1061, 0.0
        %v1071 = vsel %vm479, %v1060, 0.0
        %v1072 = vsel %vm480, %v1059, 0.0
        %v1073 = vsel %vm481, %v1058, 0.0
        %v1074 = vsel %vm482, %v1057, 0.0
        %v1075 = vsel %vm483, %v1056, 0.0
        %v1076 = vsel %vm484, %v1055, 0.0
        %v1077 = vsel %vm485, %v1054, 0.0
        %v1078 = vsel %vm486, %v1053, 0.0
        %v1079 = vsel %vm487, %v1052, 0.0
        %v1080 = vsel %vm488, %v1051, 0.0
        %v1081 = vsel %vm489, %v1050, 0.0
        %v1082 = vrot.slane %v1018, 1
        %v1083 = vrot.slane %v1019, 1
        %v1084 = vrot.slane %v1020, 1
        %v1085 = vrot.slane %v1021, 1
        %v1086 = vrot.slane %v1022, 1
        %v1087 = vrot.slane %v1023, 1
        %v1088 = vrot.slane %v1024, 1
        %v1089 = vrot.slane %v1025, 1
        %v1090 = vrot.slane %v1026, 1
        %v1091 = vrot.slane %v1027, 1
        %v1092 = vrot.slane %v1028, 1
        %v1093 = vrot.slane %v1029, 1
        %v1094 = vrot.slane %v1030, 1
        %v1095 = vrot.slane %v1031, 1
        %v1096 = vrot.slane %v1032, 1
        %v1097 = vrot.slane %v1033, 1
        %v1098 = vsel %vm571, %v1096, %v1097
        %v1099 = vsel %vm571, %v1095, %v1096
        %v1100 = vsel %vm571, %v1094, %v1095
        %v1101 = vsel %vm571, %v1093, %v1094
        %v1102 = vsel %vm571, %v1092, %v1093
        %v1103 = vsel %vm571, %v1091, %v1092
        %v1104 = vsel %vm571, %v1090, %v1091
        %v1105 = vsel %vm571, %v1089, %v1090
        %v1106 = vsel %vm571, %v1088, %v1089
        %v1107 = vsel %vm571, %v1087, %v1088
        %v1108 = vsel %vm571, %v1086, %v1087
        %v1109 = vsel %vm571, %v1085, %v1086
        %v1110 = vsel %vm571, %v1084, %v1085
        %v1111 = vsel %vm571, %v1083, %v1084
        %v1112 = vsel %vm571, %v1082, %v1083
        %v1113 = vsel %vm571, %v1097, %v1082
        %v1114 = vsel %vm490, %v1112, 0.0
        %v1115 = vsel %vm491, %v1111, 0.0
        %v1116 = vsel %vm492, %v1110, 0.0
        %v1117 = vsel %vm493, %v1109, 0.0
        %v1118 = vsel %vm494, %v1108, 0.0
        %v1119 = vsel %vm495, %v1107, 0.0
        %v1120 = vsel %vm496, %v1106, 0.0
        %v1121 = vsel %vm497, %v1105, 0.0
        %v1122 = vsel %vm498, %v1104, 0.0
        %v1123 = vsel %vm499, %v1103, 0.0
        %v1124 = vsel %vm500, %v1102, 0.0
        %v1125 = vsel %vm501, %v1101, 0.0
        %v1126 = vsel %vm502, %v1100, 0.0
        %v1127 = vsel %vm503, %v1099, 0.0
        %v1128 = vsel %vm504, %v1098, 0.0
        %v1129 = vsel %vm505, %v1113, 0.0
        %v1130 = vpack.c.bf16 %v1067, %v1066
        %v1131 = vpack.c.bf16 %v1019, %v1018
        %v1132 = vpack.c.bf16 %v1115, %v1114
        %v1133 = vpack.c.bf16 %v1069, %v1068
        %v1134 = vpack.c.bf16 %v1021, %v1020
        %v1135 = vpack.c.bf16 %v1117, %v1116
        %v1136 = vpack.c.bf16 %v1071, %v1070
        %v1137 = vpack.c.bf16 %v1023, %v1022
        %v1138 = vpack.c.bf16 %v1119, %v1118
        %v1139 = vpack.c.bf16 %v1073, %v1072
        %v1140 = vpack.c.bf16 %v1025, %v1024
        %v1141 = vpack.c.bf16 %v1121, %v1120
        %v1142 = vpack.c.bf16 %v1075, %v1074
        %v1143 = vpack.c.bf16 %v1027, %v1026
        %v1144 = vpack.c.bf16 %v1123, %v1122
        %v1145 = vpack.c.bf16 %v1077, %v1076
        %v1146 = vpack.c.bf16 %v1029, %v1028
        %v1147 = vpack.c.bf16 %v1125, %v1124
        %v1148 = vpack.c.bf16 %v1079, %v1078
        %v1149 = vpack.c.bf16 %v1031, %v1030
        %v1150 = vpack.c.bf16 %v1127, %v1126
        %v1151 = vpack.c.bf16 %v1081, %v1080
        %v1152 = vpack.c.bf16 %v1033, %v1032
        %v1153 = vpack.c.bf16 %v1129, %v1128
        %v1154 = vld [vmem:[#allocation7] sm:$0xf]
        %v1155 = vld [vmem:[#allocation7 + $0x4] sm:$0xf]
        %v1156 = vld [vmem:[#allocation7 + $0x8] sm:$0xf]
        %v1157 = vld [vmem:[#allocation7 + $0xc] sm:$0xf]
        %v1158 = vld [vmem:[#allocation7 + $0x10] sm:$0xf]
        %v1159 = vld [vmem:[#allocation7 + $0x14] sm:$0xf]
        %v1160 = vld [vmem:[#allocation7 + $0x18] sm:$0xf]
        %v1161 = vld [vmem:[#allocation7 + $0x1c] sm:$0xf]
        %v1162 = vld [vmem:[#allocation7 + $0x20] sm:$0xf]
        %v1163 = vld [vmem:[#allocation7 + $0x24] sm:$0xf]
        %v1164 = vld [vmem:[#allocation7 + $0x28] sm:$0xf]
        %v1165 = vld [vmem:[#allocation7 + $0x2c] sm:$0xf]
        %v1166 = vld [vmem:[#allocation7 + $0x30] sm:$0xf]
        %v1167 = vld [vmem:[#allocation7 + $0x34] sm:$0xf]
        %v1168 = vld [vmem:[#allocation7 + $0x38] sm:$0xf]
        %v1169 = vld [vmem:[#allocation7 + $0x3c] sm:$0xf]
        %v1170 = vld [vmem:[#allocation7 + $0x40] sm:$0xf]
        %v1171 = vld [vmem:[#allocation7 + $0x44] sm:$0xf]
        %v1172 = vld [vmem:[#allocation7 + $0x48] sm:$0xf]
        %v1173 = vld [vmem:[#allocation7 + $0x4c] sm:$0xf]
        %v1174 = vld [vmem:[#allocation7 + $0x50] sm:$0xf]
        %v1175 = vld [vmem:[#allocation7 + $0x54] sm:$0xf]
        %v1176 = vld [vmem:[#allocation7 + $0x58] sm:$0xf]
        %v1177 = vld [vmem:[#allocation7 + $0x5c] sm:$0xf]
        %v1178 = vld [vmem:[#allocation7 + $0x60] sm:$0xf]
        %v1179 = vld [vmem:[#allocation7 + $0x64] sm:$0xf]
        %v1180 = vld [vmem:[#allocation7 + $0x68] sm:$0xf]
        %v1181 = vld [vmem:[#allocation7 + $0x6c] sm:$0xf]
        %v1182 = vld [vmem:[#allocation7 + $0x70] sm:$0xf]
        %v1183 = vld [vmem:[#allocation7 + $0x74] sm:$0xf]
        %v1184 = vld [vmem:[#allocation7 + $0x78] sm:$0xf]
        %v1185 = vld [vmem:[#allocation7 + $0x7c] sm:$0xf]
        %v1186 = vld [vmem:[#allocation7 + $0x80] sm:$0xf]
        %v1187 = vld [vmem:[#allocation7 + $0x84] sm:$0xf]
        %v1188 = vld [vmem:[#allocation7 + $0x88] sm:$0xf]
        %v1189 = vld [vmem:[#allocation7 + $0x8c] sm:$0xf]
        %v1190 = vld [vmem:[#allocation7 + $0x90] sm:$0xf]
        %v1191 = vld [vmem:[#allocation7 + $0x94] sm:$0xf]
        %v1192 = vld [vmem:[#allocation7 + $0x98] sm:$0xf]
        %v1193 = vld [vmem:[#allocation7 + $0x9c] sm:$0xf]
        %v1194 = vld [vmem:[#allocation7 + $0xa0] sm:$0xf]
        %v1195 = vld [vmem:[#allocation7 + $0xa4] sm:$0xf]
        %v1196 = vld [vmem:[#allocation7 + $0xa8] sm:$0xf]
        %v1197 = vld [vmem:[#allocation7 + $0xac] sm:$0xf]
        %v1198 = vld [vmem:[#allocation7 + $0xb0] sm:$0xf]
        %v1199 = vld [vmem:[#allocation7 + $0xb4] sm:$0xf]
        %v1200 = vld [vmem:[#allocation7 + $0xb8] sm:$0xf]
        %v1201 = vld [vmem:[#allocation7 + $0xbc] sm:$0xf]
        %v1202 = vlaneseq
        %v1203 = vshrl.u32 %v1202, 7
        %v1204 = vsub.s32 1, %v1203
        %v1205 = vrot.slane %v264, %v1204
        %v1254 = vunpack.c.l.b16 %v1154
        %v1255 = vunpack.c.l.b16 %v1155
        %v1256 = vunpack.c.l.b16 %v1156
        %v1257 = vunpack.c.l.b16 %v1157
        %v1258 = vunpack.c.l.b16 %v1158
        %v1259 = vunpack.c.l.b16 %v1159
        %v1260 = vunpack.c.l.b16 %v1160
        %v1261 = vunpack.c.l.b16 %v1161
        %v1262 = vunpack.c.l.b16 %v1162
        %v1263 = vunpack.c.l.b16 %v1163
        %v1264 = vunpack.c.l.b16 %v1164
        %v1265 = vunpack.c.l.b16 %v1165
        %v1266 = vunpack.c.l.b16 %v1166
        %v1267 = vunpack.c.l.b16 %v1167
        %v1268 = vunpack.c.l.b16 %v1168
        %v1269 = vunpack.c.l.b16 %v1169
        %v1270 = vunpack.c.l.b16 %v1170
        %v1271 = vunpack.c.l.b16 %v1171
        %v1272 = vunpack.c.l.b16 %v1172
        %v1273 = vunpack.c.l.b16 %v1173
        %v1274 = vunpack.c.l.b16 %v1174
        %v1275 = vunpack.c.l.b16 %v1175
        %v1276 = vunpack.c.l.b16 %v1176
        %v1277 = vunpack.c.l.b16 %v1177
        %v1278 = vunpack.c.l.b16 %v1178
        %v1279 = vunpack.c.l.b16 %v1179
        %v1280 = vunpack.c.l.b16 %v1180
        %v1281 = vunpack.c.l.b16 %v1181
        %v1282 = vunpack.c.l.b16 %v1182
        %v1283 = vunpack.c.l.b16 %v1183
        %v1284 = vunpack.c.l.b16 %v1184
        %v1285 = vunpack.c.l.b16 %v1185
        %v1286 = vunpack.c.l.b16 %v1186
        %v1287 = vunpack.c.l.b16 %v1187
        %v1288 = vunpack.c.l.b16 %v1188
        %v1289 = vunpack.c.l.b16 %v1189
        %v1290 = vunpack.c.l.b16 %v1190
        %v1291 = vunpack.c.l.b16 %v1191
        %v1292 = vunpack.c.l.b16 %v1192
        %v1293 = vunpack.c.l.b16 %v1193
        %v1294 = vunpack.c.l.b16 %v1194
        %v1295 = vunpack.c.l.b16 %v1195
        %v1296 = vunpack.c.l.b16 %v1196
        %v1297 = vunpack.c.l.b16 %v1197
        %v1298 = vunpack.c.l.b16 %v1198
        %v1299 = vunpack.c.l.b16 %v1199
        %v1300 = vunpack.c.l.b16 %v1200
        %v1301 = vunpack.c.l.b16 %v1201
        %v1302 = vpack.c.b16 %v1255, %v1254
        %v1303 = vpack.c.b16 %v1257, %v1256
        %v1304 = vpack.c.b16 %v1259, %v1258
        %v1305 = vpack.c.b16 %v1261, %v1260
        %v1306 = vpack.c.b16 %v1263, %v1262
        %v1307 = vpack.c.b16 %v1265, %v1264
        %v1308 = vpack.c.b16 %v1267, %v1266
        %v1309 = vpack.c.b16 %v1269, %v1268
        %v1310 = vpack.c.b16 %v1271, %v1270
        %v1311 = vpack.c.b16 %v1273, %v1272
        %v1312 = vpack.c.b16 %v1275, %v1274
        %v1313 = vpack.c.b16 %v1277, %v1276
        %v1314 = vpack.c.b16 %v1279, %v1278
        %v1315 = vpack.c.b16 %v1281, %v1280
        %v1316 = vpack.c.b16 %v1283, %v1282
        %v1317 = vpack.c.b16 %v1285, %v1284
        %v1318 = vpack.c.b16 %v1287, %v1286
        %v1319 = vpack.c.b16 %v1289, %v1288
        %v1320 = vpack.c.b16 %v1291, %v1290
        %v1321 = vpack.c.b16 %v1293, %v1292
        %v1322 = vpack.c.b16 %v1295, %v1294
        %v1323 = vpack.c.b16 %v1297, %v1296
        %v1324 = vpack.c.b16 %v1299, %v1298
        %v1325 = vpack.c.b16 %v1301, %v1300
        %1350 = vmatprep.subr.bf16.mxu0 0
        %1351 = vmatpush1.bf16.msra.mxu0 %v1302
        %1352 = vmatprep.subr.bf16.mxu0 0
        %1353 = vmatpush1.bf16.msra.mxu0 %v1303
        %1354 = vmatprep.subr.bf16.mxu0 0
        %1355 = vmatpush1.bf16.msra.mxu0 %v1304
        %1356 = vmatprep.subr.bf16.mxu0 0
        %1357 = vmatpush1.bf16.msra.mxu0 %v1305
        %1358 = vmatprep.subr.bf16.mxu0 0
        %1359 = vmatpush1.bf16.msra.mxu0 %v1306
        %1360 = vmatprep.subr.bf16.mxu0 0
        %1361 = vmatpush1.bf16.msra.mxu0 %v1307
        %1362 = vmatprep.subr.bf16.mxu0 0
        %1363 = vmatpush1.bf16.msra.mxu0 %v1308
        %1364 = vmatprep.subr.bf16.mxu0 0
        %1365 = vmatpush1.bf16.msra.mxu0 %v1309
        %1366 = vmatprep.subr.bf16.mxu0 0
        %1367 = vmatpush1.bf16.msra.mxu0 %v1310
        %1368 = vmatprep.subr.bf16.mxu0 0
        %1369 = vmatpush1.bf16.msra.mxu0 %v1311
        %1370 = vmatprep.subr.bf16.mxu0 0
        %1371 = vmatpush1.bf16.msra.mxu0 %v1312
        %1372 = vmatprep.subr.bf16.mxu0 0
        %1373 = vmatpush1.bf16.msra.mxu0 %v1313
        %1374 = vmatprep.subr.bf16.mxu0 0
        %1375 = vmatpush1.bf16.msra.mxu0 %v1314
        %1376 = vmatprep.subr.bf16.mxu0 0
        %1377 = vmatpush1.bf16.msra.mxu0 %v1315
        %1378 = vmatprep.subr.bf16.mxu0 0
        %1379 = vmatpush1.bf16.msra.mxu0 %v1316
        %1380 = vmatprep.subr.bf16.mxu0 0
        %1381 = vmatpush1.bf16.msra.mxu0 %v1317
        %1382 = vmatprep.mubr.bf16.mxu0 %v1131
        %1383 = vmatmul.mubr.bf16.gmra.mrb[0].mxu0 %v1130
        %v1384 = vpop.f32.mrb[0].mxu0
        %v1385 = vadd.f32 %v1205, %v1384
        %v1386 = vpop.f32.mrb[0].mxu0
        %v1387 = vpop.f32.mrb[0].mxu0
        %v1388 = vadd.f32 %v1205, %v1387
        %v1389 = vpop.f32.mrb[0].mxu0
        %1390 = vmatprep.mubr.bf16.mxu0 %v1134
        %1391 = vmatmul.mubr.bf16.gmra.mrb[0].mxu0 %v1133
        %v1392 = vpop.f32.mrb[0].mxu0
        %v1393 = vadd.f32 %v1205, %v1392
        %v1394 = vpop.f32.mrb[0].mxu0
        %v1395 = vpop.f32.mrb[0].mxu0
        %v1396 = vadd.f32 %v1205, %v1395
        %v1397 = vpop.f32.mrb[0].mxu0
        %1398 = vmatprep.mubr.bf16.mxu0 %v1137
        %1399 = vmatmul.mubr.bf16.gmra.mrb[0].mxu0 %v1136
        %v1400 = vpop.f32.mrb[0].mxu0
        %v1401 = vadd.f32 %v1205, %v1400
        %v1402 = vpop.f32.mrb[0].mxu0
        %v1403 = vpop.f32.mrb[0].mxu0
        %v1404 = vadd.f32 %v1205, %v1403
        %v1405 = vpop.f32.mrb[0].mxu0
        %1406 = vmatprep.mubr.bf16.mxu0 %v1140
        %1407 = vmatmul.mubr.bf16.gmra.mrb[0].mxu0 %v1139
        %v1408 = vpop.f32.mrb[0].mxu0
        %v1409 = vadd.f32 %v1205, %v1408
        %v1410 = vpop.f32.mrb[0].mxu0
        %v1411 = vpop.f32.mrb[0].mxu0
        %v1412 = vadd.f32 %v1205, %v1411
        %v1413 = vpop.f32.mrb[0].mxu0
        %1414 = vmatprep.mubr.bf16.mxu0 %v1143
        %1415 = vmatmul.mubr.bf16.gmra.mrb[0].mxu0 %v1142
        %v1416 = vpop.f32.mrb[0].mxu0
        %v1417 = vadd.f32 %v1205, %v1416
        %v1418 = vpop.f32.mrb[0].mxu0
        %v1419 = vpop.f32.mrb[0].mxu0
        %v1420 = vadd.f32 %v1205, %v1419
        %v1421 = vpop.f32.mrb[0].mxu0
        %1422 = vmatprep.mubr.bf16.mxu0 %v1146
        %1423 = vmatmul.mubr.bf16.gmra.mrb[0].mxu0 %v1145
        %v1424 = vpop.f32.mrb[0].mxu0
        %v1425 = vadd.f32 %v1205, %v1424
        %v1426 = vpop.f32.mrb[0].mxu0
        %v1427 = vpop.f32.mrb[0].mxu0
        %v1428 = vadd.f32 %v1205, %v1427
        %v1429 = vpop.f32.mrb[0].mxu0
        %1430 = vmatprep.mubr.bf16.mxu0 %v1149
        %1431 = vmatmul.mubr.bf16.gmra.mrb[0].mxu0 %v1148
        %v1432 = vpop.f32.mrb[0].mxu0
        %v1433 = vadd.f32 %v1205, %v1432
        %v1434 = vpop.f32.mrb[0].mxu0
        %v1435 = vpop.f32.mrb[0].mxu0
        %v1436 = vadd.f32 %v1205, %v1435
        %v1437 = vpop.f32.mrb[0].mxu0
        %1438 = vmatprep.mubr.bf16.mxu0 %v1152
        %1439 = vmatmul.mubr.bf16.gmra.mrb[0].mxu0 %v1151
        %v1440 = vpop.f32.mrb[0].mxu0
        %v1441 = vadd.f32 %v1205, %v1440
        %v1442 = vpop.f32.mrb[0].mxu0
        %v1443 = vpop.f32.mrb[0].mxu0
        %v1444 = vadd.f32 %v1205, %v1443
        %v1445 = vpop.f32.mrb[0].mxu0
        %1446 = vdwg.mxu0
        %1447 = vmatprep.subr.bf16.mxu0 0
        %1448 = vmatpush1.bf16.msra.mxu0 %v1318
        %1449 = vmatprep.subr.bf16.mxu0 0
        %1450 = vmatpush1.bf16.msra.mxu0 %v1319
        %1451 = vmatprep.subr.bf16.mxu0 0
        %1452 = vmatpush1.bf16.msra.mxu0 %v1320
        %1453 = vmatprep.subr.bf16.mxu0 0
        %1454 = vmatpush1.bf16.msra.mxu0 %v1321
        %1455 = vmatprep.subr.bf16.mxu0 0
        %1456 = vmatpush1.bf16.msra.mxu0 %v1322
        %1457 = vmatprep.subr.bf16.mxu0 0
        %1458 = vmatpush1.bf16.msra.mxu0 %v1323
        %1459 = vmatprep.subr.bf16.mxu0 0
        %1460 = vmatpush1.bf16.msra.mxu0 %v1324
        %1461 = vmatprep.subr.bf16.mxu0 0
        %1462 = vmatpush1.bf16.msra.mxu0 %v1325
        %1463 = vmatprep.subr.bf16.mxu0 0
        %1464 = vmatpush1.bf16.msra.mxu0 0
        %1465 = vmatprep.subr.bf16.mxu0 0
        %1466 = vmatpush1.bf16.msra.mxu0 0
        %1467 = vmatprep.subr.bf16.mxu0 0
        %1468 = vmatpush1.bf16.msra.mxu0 0
        %1469 = vmatprep.subr.bf16.mxu0 0
        %1470 = vmatpush1.bf16.msra.mxu0 0
        %1471 = vmatprep.subr.bf16.mxu0 0
        %1472 = vmatpush1.bf16.msra.mxu0 0
        %1473 = vmatprep.subr.bf16.mxu0 0
        %1474 = vmatpush1.bf16.msra.mxu0 0
        %1475 = vmatprep.subr.bf16.mxu0 0
        %1476 = vmatpush1.bf16.msra.mxu0 0
        %1477 = vmatprep.subr.bf16.mxu0 0
        %1478 = vmatpush1.bf16.msra.mxu0 0
        %1479 = vmatprep.mubr.bf16.mxu0 0
        %1480 = vmatmul.mubr.bf16.gmra.mrb[0].mxu0 %v1132
        %v1481 = vpop.f32.mrb[0].mxu0
        %v1482 = vadd.f32 %v1385, %v1481
        %v1483 = vpop.f32.mrb[0].mxu0
        %v1484 = vpop.f32.mrb[0].mxu0
        %v1485 = vadd.f32 %v1388, %v1484
        %v1486 = vpop.f32.mrb[0].mxu0
        %1487 = vmatprep.mubr.bf16.mxu0 0
        %1488 = vmatmul.mubr.bf16.gmra.mrb[0].mxu0 %v1135
        %v1489 = vpop.f32.mrb[0].mxu0
        %v1490 = vadd.f32 %v1393, %v1489
        %v1491 = vpop.f32.mrb[0].mxu0
        %v1492 = vpop.f32.mrb[0].mxu0
        %v1493 = vadd.f32 %v1396, %v1492
        %v1494 = vpop.f32.mrb[0].mxu0
        %1495 = vmatprep.mubr.bf16.mxu0 0
        %1496 = vmatmul.mubr.bf16.gmra.mrb[0].mxu0 %v1138
        %v1497 = vpop.f32.mrb[0].mxu0
        %v1498 = vadd.f32 %v1401, %v1497
        %v1499 = vpop.f32.mrb[0].mxu0
        %v1500 = vpop.f32.mrb[0].mxu0
        %v1501 = vadd.f32 %v1404, %v1500
        %v1502 = vpop.f32.mrb[0].mxu0
        %1503 = vmatprep.mubr.bf16.mxu0 0
        %1504 = vmatmul.mubr.bf16.gmra.mrb[0].mxu0 %v1141
        %v1505 = vpop.f32.mrb[0].mxu0
        %v1506 = vadd.f32 %v1409, %v1505
        %v1507 = vpop.f32.mrb[0].mxu0
        %v1508 = vpop.f32.mrb[0].mxu0
        %v1509 = vadd.f32 %v1412, %v1508
        %v1510 = vpop.f32.mrb[0].mxu0
        %1511 = vmatprep.mubr.bf16.mxu0 0
        %1512 = vmatmul.mubr.bf16.gmra.mrb[0].mxu0 %v1144
        %v1513 = vpop.f32.mrb[0].mxu0
        %v1514 = vadd.f32 %v1417, %v1513
        %v1515 = vpop.f32.mrb[0].mxu0
        %v1516 = vpop.f32.mrb[0].mxu0
        %v1517 = vadd.f32 %v1420, %v1516
        %v1518 = vpop.f32.mrb[0].mxu0
        %1519 = vmatprep.mubr.bf16.mxu0 0
        %1520 = vmatmul.mubr.bf16.gmra.mrb[0].mxu0 %v1147
        %v1521 = vpop.f32.mrb[0].mxu0
        %v1522 = vadd.f32 %v1425, %v1521
        %v1523 = vpop.f32.mrb[0].mxu0
        %v1524 = vpop.f32.mrb[0].mxu0
        %v1525 = vadd.f32 %v1428, %v1524
        %v1526 = vpop.f32.mrb[0].mxu0
        %1527 = vmatprep.mubr.bf16.mxu0 0
        %1528 = vmatmul.mubr.bf16.gmra.mrb[0].mxu0 %v1150
        %v1529 = vpop.f32.mrb[0].mxu0
        %v1530 = vadd.f32 %v1433, %v1529
        %v1531 = vpop.f32.mrb[0].mxu0
        %v1532 = vpop.f32.mrb[0].mxu0
        %v1533 = vadd.f32 %v1436, %v1532
        %v1534 = vpop.f32.mrb[0].mxu0
        %1535 = vmatprep.mubr.bf16.mxu0 0
        %1536 = vmatmul.mubr.bf16.gmra.mrb[0].mxu0 %v1153
        %v1537 = vpop.f32.mrb[0].mxu0
        %v1538 = vadd.f32 %v1441, %v1537
        %v1539 = vpop.f32.mrb[0].mxu0
        %v1540 = vpop.f32.mrb[0].mxu0
        %v1541 = vadd.f32 %v1444, %v1540
        %v1542 = vpop.f32.mrb[0].mxu0
        %1543 = vdwg.mxu0
        %v1544 = vadd.f32 %v1482, %v248
        %v1545 = vadd.f32 %v1485, %v249
        %v1546 = vadd.f32 %v1490, %v250
        %v1547 = vadd.f32 %v1493, %v251
        %v1548 = vadd.f32 %v1498, %v252
        %v1549 = vadd.f32 %v1501, %v253
        %v1550 = vadd.f32 %v1506, %v254
        %v1551 = vadd.f32 %v1509, %v255
        %v1552 = vadd.f32 %v1514, %v256
        %v1553 = vadd.f32 %v1517, %v257
        %v1554 = vadd.f32 %v1522, %v258
        %v1555 = vadd.f32 %v1525, %v259
        %v1556 = vadd.f32 %v1530, %v260
        %v1557 = vadd.f32 %v1533, %v261
        %v1558 = vadd.f32 %v1538, %v262
        %v1559 = vadd.f32 %v1541, %v263
        %v1560 = vmax.f32 %v1544, 0.0
        %v1561 = vmax.f32 %v1545, 0.0
        %v1562 = vmax.f32 %v1546, 0.0
        %v1563 = vmax.f32 %v1547, 0.0
        %v1564 = vmax.f32 %v1548, 0.0
        %v1565 = vmax.f32 %v1549, 0.0
        %v1566 = vmax.f32 %v1550, 0.0
        %v1567 = vmax.f32 %v1551, 0.0
        %v1568 = vmax.f32 %v1552, 0.0
        %v1569 = vmax.f32 %v1553, 0.0
        %v1570 = vmax.f32 %v1554, 0.0
        %v1571 = vmax.f32 %v1555, 0.0
        %v1572 = vmax.f32 %v1556, 0.0
        %v1573 = vmax.f32 %v1557, 0.0
        %v1574 = vmax.f32 %v1558, 0.0
        %v1575 = vmax.f32 %v1559, 0.0
        %1576 = vst [vmem:[%s244] sm:$0xff] %v1560
        %1577 = vst [vmem:[%s244 + $0x8] sm:$0xff] %v1561
        %1578 = vst [vmem:[%s244 + $0x10] sm:$0xff] %v1562
        %1579 = vst [vmem:[%s244 + $0x18] sm:$0xff] %v1563
        %1580 = vst [vmem:[%s244 + $0x20] sm:$0xff] %v1564
        %1581 = vst [vmem:[%s244 + $0x28] sm:$0xff] %v1565
        %1582 = vst [vmem:[%s244 + $0x30] sm:$0xff] %v1566
        %1583 = vst [vmem:[%s244 + $0x38] sm:$0xff] %v1567
        %1584 = vst [vmem:[%s244 + $0x40] sm:$0xff] %v1568
        %1585 = vst [vmem:[%s244 + $0x48] sm:$0xff] %v1569
        %1586 = vst [vmem:[%s244 + $0x50] sm:$0xff] %v1570
        %1587 = vst [vmem:[%s244 + $0x58] sm:$0xff] %v1571
        %1588 = vst [vmem:[%s244 + $0x60] sm:$0xff] %v1572
        %1589 = vst [vmem:[%s244 + $0x68] sm:$0xff] %v1573
        %1590 = vst [vmem:[%s244 + $0x70] sm:$0xff] %v1574
        %1591 = vst [vmem:[%s244 + $0x78] sm:$0xff] %v1575
        %s1592 = sand.u32 %s119, 1
        %s1593 = scalar_lea.sflag [#allocation4], %s1592
        %s1594 = sand.u32 %s119, 1
        %s1595 = smul.addr %s1594, 128
        %s1596 = scalar_lea.vmem [#allocation8], %s1595
        // Predicated region
        $region49: #{tpu_custom_call.1} parent=35 // pred_check
          %p1597 = pneg %p129
        $region50: #{tpu_custom_call.1} parent=35 // pred_check_branch
          %1599 = sbr.rel (%p1597) target = $region52
        $region51: #{tpu_custom_call.1} parent=35 // pred_region
          %s1600 = smul.u32 16, %s22
          %s1602 = ssub.s32 2048, 2048
          %1603 = vsyncadd %s1593, %s1602
          %s1604 = smul.addr %s1600, 128
          %s1605 = scalar_lea.hbm %s4, %s1604
          %s1606 = sshll.u32 %s1596, 4
          %s1607 = int_to_ptr.vmem [resolvable:$true] %s1606
          %1612 = dma.vmem_to_hbm [thread:$0]  %s1607, 2048, %s1605, %s1593, 128, 128, 8
        $region52: #{tpu_custom_call.1} parent=35 // pred_fallthru
          _
      $region36: #{tpu_custom_call.1} parent=5 // pred_fallthru
        _
      %p1613 = scmp.le.s32.totalorder 2, %s17
      // Predicated region
      $region53: #{tpu_custom_call.1} parent=5 // pred_check
        %p1614 = pneg %p1613
      $region54: #{tpu_custom_call.1} parent=5 // pred_check_branch
        %1616 = sbr.rel (%p1614) target = $region56
      $region55: #{tpu_custom_call.1} parent=5 // pred_region
        %s1617 = ssub.s32 %s17, 2
        // Predicated region
        $region57: #{tpu_custom_call.1} parent=55 // pred_check
          %p1618 = pneg %p135
        $region58: #{tpu_custom_call.1} parent=55 // pred_check_branch
          %1620 = sbr.rel (%p1618) target = $region60
        $region59: #{tpu_custom_call.1} parent=55 // pred_region
          %s1621 = sand.u32 %s120, 1
          %s1622 = scalar_lea.sflag [#allocation4], %s1621
          %s1623 = sand.u32 %s120, 1
          %s1624 = smul.addr %s1623, 128
          %s1625 = scalar_lea.vmem [#allocation8], %s1624
          %1626 = dma.done %s1622, 2048
        $region60: #{tpu_custom_call.1} parent=55 // pred_fallthru
          _
      $region56: #{tpu_custom_call.1} parent=5 // pred_fallthru
        _
    $region6: #{tpu_custom_call.1} parent=1 // loop_footer
      %s21 = sadd.s32 1, %s17
    $region7: #{tpu_custom_call.1} parent=1 // loop_footer_branch
      %16 = sbr.rel target = $region3
    $region8: #{tpu_custom_call.1} parent=1 // loop_exit
      _
    %1627 = vsyncpa [#allocation3], 1
    %s1628 = scalar_lea.sflag [#allocation3], 1
    %1629 = vsyncpa %s1628, 1
    %1630 = vsyncpa [#allocation6], 1
    %1631 = vsyncpa [#allocation4], 1
    %s1632 = scalar_lea.sflag [#allocation4], 1
    %1633 = vsyncpa %s1632, 1

</llo_original>
